<compile_context>
chip_gen: v7x
topology: tpu7x:2x2x1
jax: 0.10.0
libtpu: 0.0.40
codegen_flags: <defaults>
</compile_context>

<pallas_src>
import functools
import math

import jax
import jax.numpy as jnp
from jax import lax
from jax.experimental import pallas as pl
from jax.experimental.pallas import tpu as pltpu


def _round_up(x, m):
    return ((x + m - 1) // m) * m


# ----------------------------------------------------------------------------
# Pallas kernel 1: tiled matmul with fused bias + optional ReLU epilogue.
# Used for every Conv+BN+ReLU (via im2col, BN folded) and for the final Linear.
# ----------------------------------------------------------------------------
_TM = _TN = _TK = 256


def _matmul_kernel(x_ref, w_ref, b_ref, o_ref, acc_ref, *, relu):
    @pl.when(pl.program_id(2) == 0)
    def _init():
        acc_ref[...] = jnp.zeros_like(acc_ref)

    acc_ref[...] += jnp.dot(x_ref[...], w_ref[...],
                            preferred_element_type=jnp.float32)

    @pl.when(pl.program_id(2) == pl.num_programs(2) - 1)
    def _finalize():
        out = acc_ref[...] + b_ref[...]          # (TM,TN) + (1,TN) broadcast
        if relu:
            out = jnp.maximum(out, 0.0)
        o_ref[...] = out.astype(o_ref.dtype)


@functools.partial(jax.jit, static_argnames=("relu",))
def _matmul_padded(xp, wp, bp, relu):
    Mp, Kp = xp.shape
    _, Np = wp.shape
    grid = (Mp // _TM, Np // _TN, Kp // _TK)
    return pl.pallas_call(
        functools.partial(_matmul_kernel, relu=relu),
        out_shape=jax.ShapeDtypeStruct((Mp, Np), jnp.float32),
        grid_spec=pltpu.PrefetchScalarGridSpec(
            num_scalar_prefetch=0,
            grid=grid,
            in_specs=[
                pl.BlockSpec((_TM, _TK), lambda i, j, k: (i, k)),
                pl.BlockSpec((_TK, _TN), lambda i, j, k: (k, j)),
                pl.BlockSpec((1, _TN), lambda i, j, k: (0, j)),
            ],
            out_specs=pl.BlockSpec((_TM, _TN), lambda i, j, k: (i, j)),
            scratch_shapes=[pltpu.VMEM((_TM, _TN), jnp.float32)],
        ),
        compiler_params=pltpu.CompilerParams(
            dimension_semantics=("parallel", "parallel", "arbitrary"),
            vmem_limit_bytes=32 * 1024 * 1024,
        ),
    )(xp, wp, bp)


def matmul_bias_act(x, w, b, relu=True):
    """x: (M, K), w: (K, N) (already in K-major layout -> no transpose), b: (N,)."""
    M, K = x.shape
    K2, N = w.shape
    assert K == K2
    Mp, Kp, Np = _round_up(M, _TM), _round_up(K, _TK), _round_up(N, _TN)
    xp = jnp.pad(x, ((0, Mp - M), (0, Kp - K))) if (Mp, Kp) != (M, K) else x
    wp = jnp.pad(w, ((0, Kp - K), (0, Np - N))) if (Kp, Np) != (K, N) else w
    bp = jnp.pad(b, ((0, Np - N),)) if Np != N else b
    out = _matmul_padded(xp, wp, bp.reshape(1, Np), relu=relu)
    return out[:M, :N]


# ----------------------------------------------------------------------------
# Pallas kernel 2: window-stacked pooling reduce (max / mean), C on lanes.
# ----------------------------------------------------------------------------
def _pool_kernel(x_ref, o_ref, *, op):
    x = x_ref[...]                               # (KK, TM, C)
    if op == "max":
        o_ref[...] = jnp.max(x, axis=0)
    else:                                        # mean: explicit 1/KK multiply
        o_ref[...] = jnp.sum(x, axis=0) * (1.0 / x.shape[0])


@functools.partial(jax.jit, static_argnames=("op",))
def _pool_call(stacked, op):
    KK, Mp, C = stacked.shape
    tm = min(512, Mp)
    grid = (Mp // tm,)
    return pl.pallas_call(
        functools.partial(_pool_kernel, op=op),
        out_shape=jax.ShapeDtypeStruct((Mp, C), stacked.dtype),
        grid_spec=pltpu.PrefetchScalarGridSpec(
            num_scalar_prefetch=0,
            grid=grid,
            in_specs=[pl.BlockSpec((KK, tm, C), lambda i: (0, i, 0))],
            out_specs=pl.BlockSpec((tm, C), lambda i: (i, 0)),
        ),
        compiler_params=pltpu.CompilerParams(
            dimension_semantics=("parallel",),
            vmem_limit_bytes=32 * 1024 * 1024,
        ),
    )(stacked)


def _pool(x, k, stride, padding, op):
    """x: (N, H, W, C) channels-last."""
    N, H, W, C = x.shape
    OH = (H + 2 * padding - k) // stride + 1
    OW = (W + 2 * padding - k) // stride + 1
    pad_val = -1e30 if op == "max" else 0.0
    if padding > 0:
        x = jnp.pad(x, ((0, 0), (padding, padding), (padding, padding), (0, 0)),
                    constant_values=pad_val)
    wins = []
    for i in range(k):
        for j in range(k):
            wins.append(x[:, i:i + stride * (OH - 1) + 1:stride,
                          j:j + stride * (OW - 1) + 1:stride, :])
    stacked = jnp.stack(wins, axis=0).reshape(k * k, N * OH * OW, C)
    M = N * OH * OW
    tm = min(512, _round_up(M, 8))
    Mp = _round_up(M, tm)
    if Mp != M:
        stacked = jnp.pad(stacked, ((0, 0), (0, Mp - M), (0, 0)))
    out = _pool_call(stacked, op=op)
    return out[:M].reshape(N, OH, OW, C)


def maxpool(x, k, stride, padding):
    return _pool(x, k, stride, padding, op="max")


def avgpool(x, k, stride):
    return _pool(x, k, stride, 0, op="mean")


# ----------------------------------------------------------------------------
# conv_block (Conv2d + BatchNorm2d + ReLU) via im2col + fused Pallas matmul.
# ----------------------------------------------------------------------------
_BN_EPS = 1e-5


def _fold_bn(p):
    scale = p["gamma"] / jnp.sqrt(p["var"] + _BN_EPS)          # (Cout,)
    w_eff = p["w"] * scale                                     # (KH,KW,Cin,Cout)
    b_eff = (p["b"] - p["mean"]) * scale + p["beta"]           # (Cout,)
    return w_eff, b_eff


def conv_block_fwd(x, p, stride=1, padding=0):
    w_eff, b_eff = _fold_bn(p)
    N, H, W, Cin = x.shape
    KH, KW, _, Cout = w_eff.shape
    OH = (H + 2 * padding - KH) // stride + 1
    OW = (W + 2 * padding - KW) // stride + 1
    if padding > 0:
        x = jnp.pad(x, ((0, 0), (padding, padding), (padding, padding), (0, 0)))
    cols = []
    for i in range(KH):
        for j in range(KW):
            cols.append(x[:, i:i + stride * (OH - 1) + 1:stride,
                          j:j + stride * (OW - 1) + 1:stride, :])
    patches = jnp.concatenate(cols, axis=-1).reshape(N * OH * OW, KH * KW * Cin)
    out = matmul_bias_act(patches, w_eff.reshape(KH * KW * Cin, Cout), b_eff,
                          relu=True)
    return out.reshape(N, OH, OW, Cout)


def inception_fwd(x, p):
    b1 = conv_block_fwd(x, p["b1"])
    b2 = conv_block_fwd(conv_block_fwd(x, p["b2a"]), p["b2b"], stride=1, padding=1)
    b3 = conv_block_fwd(conv_block_fwd(x, p["b3a"]), p["b3b"], stride=1, padding=2)
    b4 = conv_block_fwd(maxpool(x, 3, 1, 1), p["b4"])
    return jnp.concatenate([b1, b2, b3, b4], axis=-1)


def googlenet_forward(x_nchw, params):
    """Pallas-backed GoogLeNetClient.forward. x_nchw: (N, 3, H, W) -> (N, classes)."""
    x = jnp.transpose(x_nchw, (0, 2, 3, 1)).astype(jnp.float32)   # NHWC: C on lanes
    x = conv_block_fwd(x, params["conv1"], stride=2, padding=3)
    x = maxpool(x, 3, 2, 1)
    x = conv_block_fwd(x, params["conv2"], stride=1, padding=1)
    x = maxpool(x, 3, 2, 1)
    x = inception_fwd(x, params["3a"])
    x = inception_fwd(x, params["3b"])
    x = maxpool(x, 3, 2, 1)
    x = inception_fwd(x, params["4a"])
    x = inception_fwd(x, params["4b"])
    x = inception_fwd(x, params["4c"])
    x = inception_fwd(x, params["4d"])
    x = inception_fwd(x, params["4e"])
    x = maxpool(x, 3, 2, 1)
    x = inception_fwd(x, params["5a"])
    x = inception_fwd(x, params["5b"])
    x = avgpool(x, 2, 1)
    x = x.reshape(x.shape[0], -1)                  # (N, 1024)
    # TODO(synk): Dropout(p=0.4) -> identity in inference mode.
    return matmul_bias_act(x, params["fc_w"], params["fc_b"], relu=False)


# ----------------------------------------------------------------------------
# Parameter construction (deterministic, synthetic).
# ----------------------------------------------------------------------------
INCEPTION_CFG = [
    ("3a", 192, 64, 96, 128, 16, 32, 32),
    ("3b", 256, 128, 128, 192, 32, 96, 64),
    ("4a", 480, 192, 96, 208, 16, 48, 64),
    ("4b", 512, 160, 112, 224, 24, 64, 64),
    ("4c", 512, 128, 128, 256, 24, 64, 64),
    ("4d", 512, 112, 144, 288, 32, 64, 64),
    ("4e", 528, 256, 160, 320, 32, 128, 128),
    ("5a", 832, 256, 160, 320, 32, 128, 128),
    ("5b", 832, 384, 192, 384, 48, 128, 128),
]


def _conv_bn_params(key, cin, cout, k):
    k1, k2, k3, k4, k5, k6 = jax.random.split(key, 6)
    fan_in = cin * k * k
    return dict(
        w=jax.random.normal(k1, (k, k, cin, cout), jnp.float32)
          * math.sqrt(2.0 / fan_in),
        b=0.05 * jax.random.normal(k2, (cout,), jnp.float32),
        gamma=1.0 + 0.1 * jax.random.normal(k3, (cout,), jnp.float32),
        beta=0.1 * jax.random.normal(k4, (cout,), jnp.float32),
        mean=0.1 * jax.random.normal(k5, (cout,), jnp.float32),
        var=1.0 + 0.1 * jax.random.uniform(k6, (cout,), jnp.float32),
    )


def _inception_params(key, cin, o1, r3, o3, r5, o5, opool):
    ks = jax.random.split(key, 6)
    return dict(
        b1=_conv_bn_params(ks[0], cin, o1, 1),
        b2a=_conv_bn_params(ks[1], cin, r3, 1),
        b2b=_conv_bn_params(ks[2], r3, o3, 3),
        b3a=_conv_bn_params(ks[3], cin, r5, 1),
        b3b=_conv_bn_params(ks[4], r5, o5, 5),
        b4=_conv_bn_params(ks[5], cin, opool, 1),
    )


def build_params(key, in_channels, num_classes):
    keys = jax.random.split(key, 3 + len(INCEPTION_CFG))
    params = {
        "conv1": _conv_bn_params(keys[0], in_channels, 64, 7),
        "conv2": _conv_bn_params(keys[1], 64, 192, 3),
    }
    for i, (name, cin, o1, r3, o3, r5, o5, opool) in enumerate(INCEPTION_CFG):
        params[name] = _inception_params(keys[2 + i], cin, o1, r3, o3, r5, o5, opool)
    kf1, kf2 = jax.random.split(keys[-1])
    params["fc_w"] = jax.random.normal(kf1, (1024, num_classes), jnp.float32) \
        * (1.0 / math.sqrt(1024.0))
    params["fc_b"] = 0.05 * jax.random.normal(kf2, (num_classes,), jnp.float32)
    return params


# ----------------------------------------------------------------------------
# Pure JAX/XLA reference (same folded-BN / eval-mode semantics) for checking.
# ----------------------------------------------------------------------------
def conv_block_ref(x, p, stride=1, padding=0):
    y = lax.conv_general_dilated(
        x, p["w"], window_strides=(stride, stride),
        padding=((padding, padding), (padding, padding)),
        dimension_numbers=("NHWC", "HWIO", "NHWC"))
    scale = p["gamma"] / jnp.sqrt(p["var"] + _BN_EPS)
    return jnp.maximum((y + p["b"] - p["mean"]) * scale + p["beta"], 0.0)


def maxpool_ref(x, k, s, p):
    return lax.reduce_window(x, -jnp.inf, lax.max, (1, k, k, 1), (1, s, s, 1),
                             ((0, 0), (p, p), (p, p), (0, 0)))


def avgpool_ref(x, k, s):
    y = lax.reduce_window(x, 0.0, lax.add, (1, k, k, 1), (1, s, s, 1),
                          ((0, 0), (0, 0), (0, 0), (0, 0)))
    return y / float(k * k)


def inception_ref(x, p):
    b1 = conv_block_ref(x, p["b1"])
    b2 = conv_block_ref(conv_block_ref(x, p["b2a"]), p["b2b"], 1, 1)
    b3 = conv_block_ref(conv_block_ref(x, p["b3a"]), p["b3b"], 1, 2)
    b4 = conv_block_ref(maxpool_ref(x, 3, 1, 1), p["b4"])
    return jnp.concatenate([b1, b2, b3, b4], axis=-1)


def googlenet_forward_ref(x_nchw, params):
    x = jnp.transpose(x_nchw, (0, 2, 3, 1)).astype(jnp.float32)
    x = conv_block_ref(x, params["conv1"], 2, 3)
    x = maxpool_ref(x, 3, 2, 1)
    x = conv_block_ref(x, params["conv2"], 1, 1)
    x = maxpool_ref(x, 3, 2, 1)
    x = inception_ref(x, params["3a"])
    x = inception_ref(x, params["3b"])
    x = maxpool_ref(x, 3, 2, 1)
    for name in ("4a", "4b", "4c", "4d", "4e"):
        x = inception_ref(x, params[name])
    x = maxpool_ref(x, 3, 2, 1)
    x = inception_ref(x, params["5a"])
    x = inception_ref(x, params["5b"])
    x = avgpool_ref(x, 2, 1)
    x = x.reshape(x.shape[0], -1)
    return x @ params["fc_w"] + params["fc_b"]


if __name__ == "__main__":
    # Smallest input consistent with the module: 64x64 -> 2x2 before the
    # 2x2/stride-1 avgpool -> exactly the 1024 features fc1 expects.
    N, C_IN, HW = 2, 3, 64
    NUM_CLASSES = 10

    root = jax.random.PRNGKey(0)
    kx, kp = jax.random.split(root)
    x = jax.random.normal(kx, (N, C_IN, HW, HW), dtype=jnp.float32)
    params = build_params(kp, C_IN, NUM_CLASSES)

    out = jax.block_until_ready(googlenet_forward(x, params))
    assert out.shape == (N, NUM_CLASSES)
    assert bool(jnp.all(jnp.isfinite(out)))

    ref = jax.block_until_ready(googlenet_forward_ref(x, params))
    err = float(jnp.max(jnp.abs(out - ref)))
    scale = float(jnp.max(jnp.abs(ref)))
    assert err <= 2e-3 * max(1.0, scale), \
        f"mismatch vs reference: max|diff|={err}, max|ref|={scale}"

    print("KERNEL_OK")
</pallas_src>

<mosaic_0001>
module attributes {stable_mosaic.version = 11 : i64} {
  func.func @_matmul_kernel(%arg0: i32, %arg1: i32, %arg2: i32, %arg3: memref<256x256xf32, #tpu.memory_space<vmem>>, %arg4: memref<256x256xf32, #tpu.memory_space<vmem>>, %arg5: memref<1x256xf32, #tpu.memory_space<vmem>>, %arg6: memref<256x256xf32, #tpu.memory_space<vmem>>, %arg7: memref<256x256xf32, #tpu.memory_space<vmem>>) attributes {dimension_semantics = [#tpu.dimension_semantics<parallel>, #tpu.dimension_semantics<parallel>, #tpu.dimension_semantics<arbitrary>], iteration_bounds = array<i64: 8, 1, 1>, scalar_prefetch = 0 : i64, scratch_operands = 1 : i64, tpu.core_type = #tpu.core_type<tc>, window_params = [{transform_indices = @transform_0, window_bounds = array<i64: 256, 256>}, {transform_indices = @transform_1, window_bounds = array<i64: 256, 256>}, {transform_indices = @transform_2, window_bounds = array<i64: 1, 256>}, {transform_indices = @transform_3, window_bounds = array<i64: 256, 256>}]} {
    %c0_i32 = arith.constant 0 : i32
    %0 = arith.cmpi eq, %arg2, %c0_i32 : i32
    %1 = arith.extui %0 : i1 to i32
    %c0_i32_0 = arith.constant 0 : i32
    %2 = arith.cmpi ne, %1, %c0_i32_0 : i32
    scf.if %2 {
      %cst_10 = arith.constant 0.000000e+00 : f32
      %12 = vector.broadcast %cst_10 : f32 to vector<256x256xf32>
      %c0_11 = arith.constant 0 : index
      %c0_12 = arith.constant 0 : index
      %13 = vector.load %arg7[%c0_11, %c0_12] : memref<256x256xf32, #tpu.memory_space<vmem>>, vector<256x256xf32>
      tpu.vector_store %arg7[%c0_11, %c0_12], %12 {strides = array<i32>} : memref<256x256xf32, #tpu.memory_space<vmem>>, vector<256x256xf32>,
    } else {
    }
    %c0 = arith.constant 0 : index
    %c0_1 = arith.constant 0 : index
    %3 = vector.load %arg7[%c0, %c0_1] : memref<256x256xf32, #tpu.memory_space<vmem>>, vector<256x256xf32>
    %c0_2 = arith.constant 0 : index
    %c0_3 = arith.constant 0 : index
    %4 = vector.load %arg3[%c0_2, %c0_3] : memref<256x256xf32, #tpu.memory_space<vmem>>, vector<256x256xf32>
    %c0_4 = arith.constant 0 : index
    %c0_5 = arith.constant 0 : index
    %5 = vector.load %arg4[%c0_4, %c0_5] : memref<256x256xf32, #tpu.memory_space<vmem>>, vector<256x256xf32>
    %cst = arith.constant dense<0.000000e+00> : vector<256x256xf32>
    %6 = tpu.matmul %4, %5, %cst {dimension_numbers = #tpu.dot_dimension_numbers<[1], [0], [0], [1], [0, 0, 1, 1], [], []>} : vector<256x256xf32>, vector<256x256xf32>, vector<256x256xf32> -> vector<256x256xf32>
    %7 = arith.addf %3, %6 : vector<256x256xf32>
    %c0_6 = arith.constant 0 : index
    %c0_7 = arith.constant 0 : index
    %8 = vector.load %arg7[%c0_6, %c0_7] : memref<256x256xf32, #tpu.memory_space<vmem>>, vector<256x256xf32>
    tpu.vector_store %arg7[%c0_6, %c0_7], %7 {strides = array<i32>} : memref<256x256xf32, #tpu.memory_space<vmem>>, vector<256x256xf32>,
    %c0_i32_8 = arith.constant 0 : i32
    %9 = arith.cmpi eq, %arg2, %c0_i32_8 : i32
    %10 = arith.extui %9 : i1 to i32
    %c0_i32_9 = arith.constant 0 : i32
    %11 = arith.cmpi ne, %10, %c0_i32_9 : i32
    scf.if %11 {
      %c0_10 = arith.constant 0 : index
      %c0_11 = arith.constant 0 : index
      %12 = vector.load %arg7[%c0_10, %c0_11] : memref<256x256xf32, #tpu.memory_space<vmem>>, vector<256x256xf32>
      %c0_12 = arith.constant 0 : index
      %c0_13 = arith.constant 0 : index
      %13 = vector.load %arg5[%c0_12, %c0_13] : memref<1x256xf32, #tpu.memory_space<vmem>>, vector<1x256xf32>
      %14 = vector.broadcast %13 : vector<1x256xf32> to vector<256x256xf32>
      %15 = arith.addf %12, %14 : vector<256x256xf32>
      %cst_14 = arith.constant 0.000000e+00 : f32
      %16 = vector.broadcast %cst_14 : f32 to vector<256x256xf32>
      %17 = arith.maximumf %15, %16 : vector<256x256xf32>
      %c0_15 = arith.constant 0 : index
      %c0_16 = arith.constant 0 : index
      %18 = vector.load %arg6[%c0_15, %c0_16] : memref<256x256xf32, #tpu.memory_space<vmem>>, vector<256x256xf32>
      tpu.vector_store %arg6[%c0_15, %c0_16], %17 {strides = array<i32>} : memref<256x256xf32, #tpu.memory_space<vmem>>, vector<256x256xf32>,
    } else {
    }
    return
  }
  func.func @transform_0(%arg0: i32, %arg1: i32, %arg2: i32) -> (i32, i32) {
    %c0_i32 = arith.constant 0 : i32
    return %arg0, %arg2 : i32, i32
  }
  func.func @transform_1(%arg0: i32, %arg1: i32, %arg2: i32) -> (i32, i32) {
    %c0_i32 = arith.constant 0 : i32
    return %arg2, %arg1 : i32, i32
  }
  func.func @transform_2(%arg0: i32, %arg1: i32, %arg2: i32) -> (i32, i32) {
    %c0_i32 = arith.constant 0 : i32
    %c0_i32_0 = arith.constant 0 : i32
    return %c0_i32, %arg1 : i32, i32
  }
  func.func @transform_3(%arg0: i32, %arg1: i32, %arg2: i32) -> (i32, i32) {
    %c0_i32 = arith.constant 0 : i32
    return %arg0, %arg1 : i32, i32
  }
}

</mosaic_0001>

<llo_original>
// kernel: _matmul_padded.1
$region0: #{_matmul_padded.1}
  #allocation0 [shape = 'u32[]', space=smem, size = 0x4, offset = 0x4, fixed_abs, tag = 'smem constant byte address 0x4 - core index']
  #allocation1 [shape = 'u32[144,128]{1,0:T(1,128)}', space=vmem, size = 0x12000, scoped, tag = 'internal scratch']
  #allocation2 [shape = 'f32[256,256]{1,0:T(8,128)}', space=vmem, size = 0x40000, scoped, tag = 'scratch operand']
  %s0 = inlined_call_operand.hbm [shape: f32[2048,256], index: 0, kind: input, shape index: {}]
  %s1 = inlined_call_operand.hbm [shape: f32[256,256], index: 1, kind: input, shape index: {}]
  %s2 = inlined_call_operand.hbm [shape: f32[1,256], index: 2, kind: input, shape index: {}]
  %s3 = inlined_call_operand.hbm [shape: f32[2048,256], index: 3, kind: output, shape index: {}]
  %s4 = sld [smem:[#allocation0]]
  $region65: #{_matmul_padded.1} parent=0
    _
  %s6 = ssub.s32 1, %s4
  %s7 = scalar_select 0, %s6, %s4
  $region1: #{_matmul_padded.1} parent=0
    #allocation3 [shape = 'u8[524288]{0}', space=vmem, size = 0x80000, scoped, tag = 'input window, operand 0']
    #allocation4 [shape = 's32[2]{0}', space=sflag, size = 0x8, scoped, tag = 'scoped memory for _matmul_padded.1']
    #allocation5 [shape = 's32[2]{0}', space=sflag, size = 0x8, scoped, tag = 'scoped memory for _matmul_padded.1']
    #allocation6 [shape = 'u8[262144]{0}', space=vmem, size = 0x40000, scoped, tag = 'input window, operand 1, single buffered']
    #allocation7 [shape = 's32[1]{0}', space=sflag, size = 0x4, scoped, tag = 'scoped memory for _matmul_padded.1']
    #allocation8 [shape = 'u8[1024]{0}', space=vmem, size = 0x400, scoped, tag = 'input window, operand 2, single buffered']
    #allocation9 [shape = 'u8[524288]{0}', space=vmem, size = 0x80000, scoped, tag = 'output window, operand 0']
    %8 = vsyncpa [#allocation4], 0
    %s9 = scalar_lea.sflag [#allocation4], 1
    %10 = vsyncpa %s9, 0
    %11 = vsyncpa [#allocation7], 0
    %12 = vsyncpa [#allocation5], 0
    %s13 = scalar_lea.sflag [#allocation5], 1
    %14 = vsyncpa %s13, 0
    loop: start=0, step=1, limit=10
    $region2: #{_matmul_padded.1} parent=1 // loop_pre_header
      _
    $region3: #{_matmul_padded.1} parent=1 // loop_header
      %s16 = sphi 0, %s20
      %p17 = scmp.ge.s32.totalorder %s16, 10
      %s23 = sphi 0, %s42
      %s24 = sphi 0, %s38
      %s25 = sphi 0, %s34
      %s26 = sphi 0, %s23
      %s27 = sphi 0, %s24
      %s28 = sphi 0, %s25
      %s29 = sphi 0, %s26
      %s30 = sphi 0, %s27
      %s31 = sphi 0, %s28
      %s47 = sphi 0, %s49
      %s50 = sphi 0, %s47
      %s51 = sphi 0, %s50
      %s67 = sphi 0, %s51
      %s75 = sphi 0, %s77
      %s78 = sphi 0, %s75
      %s79 = sphi 0, %s78
      %s95 = sphi 0, %s79
      %s101 = sphi 0, %s103
      %s104 = sphi 0, %s101
      %s105 = sphi 0, %s104
      %s121 = sphi 0, %s105
      %s129 = sphi 0, %s131
      %s132 = sphi 0, %s129
      %s133 = sphi 0, %s132
      %s149 = sphi 0, %s133
    $region4: #{_matmul_padded.1} parent=1 // loop_header_branch
      %19 = sbr.rel (%p17) target = $region8
    $region5: #{_matmul_padded.1} parent=1 // loop_body
      %s21 = ssub.s32 %s16, 1
      %s22 = ssub.s32 %s16, 2
      %s32 = sadd.s32 1, %s25
      %p33 = scmp.ge.s32.totalorder %s32, 1
      %s34 = scalar_select %p33, 0, %s32
      %s35 = sadd.s32 1, %s24
      %s36 = scalar_select %p33, %s35, %s24
      %p37 = scmp.ge.s32.totalorder %s36, 1
      %s38 = scalar_select %p37, 0, %s36
      %s39 = sadd.s32 1, %s23
      %s40 = scalar_select %p37, %s39, %s23
      %p41 = scmp.ge.s32.totalorder %s40, 8
      %s42 = scalar_select %p41, 0, %s40
      %s43 = ssub.s32 %s23, %s42
      %s44 = ssub.s32 %s25, %s34
      %s45 = sor.u32 %s43, %s44
      %p46 = scmp.eq.s32.totalorder %s45, 0
      %s48 = sadd.s32 %s47, 1
      %s49 = scalar_select %p46, %s47, %s48
      %p52 = pneg %p46
      %p53 = scmp.eq.s32.totalorder %s16, 7
      %p54 = por %p52, %p53
      %p55 = scmp.ne.s32.totalorder %s47, %s50
      %p56 = scmp.eq.s32.totalorder %s16, 0
      %p57 = por %p55, %p56
      %p58 = scmp.ne.s32.totalorder %s47, %s50
      %p59 = scmp.eq.s32.totalorder %s21, 7
      %p60 = por %p58, %p59
      %p61 = scmp.ne.s32.totalorder %s50, %s51
      %p62 = scmp.eq.s32.totalorder %s21, 0
      %p63 = por %p61, %p62
      %p64 = scmp.ne.s32.totalorder %s50, %s51
      %p65 = scmp.eq.s32.totalorder %s22, 7
      %p66 = por %p64, %p65
      %p68 = scmp.ne.s32.totalorder %s51, %s67
      %p69 = scmp.eq.s32.totalorder %s22, 0
      %p70 = por %p68, %p69
      %s71 = ssub.s32 %s25, %s34
      %s72 = ssub.s32 %s24, %s38
      %s73 = sor.u32 %s71, %s72
      %p74 = scmp.eq.s32.totalorder %s73, 0
      %s76 = sadd.s32 %s75, 1
      %s77 = scalar_select %p74, %s75, %s76
      %p80 = pneg %p74
      %p81 = scmp.eq.s32.totalorder %s16, 7
      %p82 = por %p80, %p81
      %p83 = scmp.ne.s32.totalorder %s75, %s78
      %p84 = scmp.eq.s32.totalorder %s16, 0
      %p85 = por %p83, %p84
      %p86 = scmp.ne.s32.totalorder %s75, %s78
      %p87 = scmp.eq.s32.totalorder %s21, 7
      %p88 = por %p86, %p87
      %p89 = scmp.ne.s32.totalorder %s78, %s79
      %p90 = scmp.eq.s32.totalorder %s21, 0
      %p91 = por %p89, %p90
      %p92 = scmp.ne.s32.totalorder %s78, %s79
      %p93 = scmp.eq.s32.totalorder %s22, 7
      %p94 = por %p92, %p93
      %p96 = scmp.ne.s32.totalorder %s79, %s95
      %p97 = scmp.eq.s32.totalorder %s22, 0
      %p98 = por %p96, %p97
      %s99 = ssub.s32 %s24, %s38
      %p100 = scmp.eq.s32.totalorder %s99, 0
      %s102 = sadd.s32 %s101, 1
      %s103 = scalar_select %p100, %s101, %s102
      %p106 = pneg %p100
      %p107 = scmp.eq.s32.totalorder %s16, 7
      %p108 = por %p106, %p107
      %p109 = scmp.ne.s32.totalorder %s101, %s104
      %p110 = scmp.eq.s32.totalorder %s16, 0
      %p111 = por %p109, %p110
      %p112 = scmp.ne.s32.totalorder %s101, %s104
      %p113 = scmp.eq.s32.totalorder %s21, 7
      %p114 = por %p112, %p113
      %p115 = scmp.ne.s32.totalorder %s104, %s105
      %p116 = scmp.eq.s32.totalorder %s21, 0
      %p117 = por %p115, %p116
      %p118 = scmp.ne.s32.totalorder %s104, %s105
      %p119 = scmp.eq.s32.totalorder %s22, 7
      %p120 = por %p118, %p119
      %p122 = scmp.ne.s32.totalorder %s105, %s121
      %p123 = scmp.eq.s32.totalorder %s22, 0
      %p124 = por %p122, %p123
      %s125 = ssub.s32 %s23, %s42
      %s126 = ssub.s32 %s24, %s38
      %s127 = sor.u32 %s125, %s126
      %p128 = scmp.eq.s32.totalorder %s127, 0
      %s130 = sadd.s32 %s129, 1
      %s131 = scalar_select %p128, %s129, %s130
      %p134 = pneg %p128
      %p135 = scmp.eq.s32.totalorder %s16, 7
      %p136 = por %p134, %p135
      %p137 = scmp.ne.s32.totalorder %s129, %s132
      %p138 = scmp.eq.s32.totalorder %s16, 0
      %p139 = por %p137, %p138
      %p140 = scmp.ne.s32.totalorder %s129, %s132
      %p141 = scmp.eq.s32.totalorder %s21, 7
      %p142 = por %p140, %p141
      %p143 = scmp.ne.s32.totalorder %s132, %s133
      %p144 = scmp.eq.s32.totalorder %s21, 0
      %p145 = por %p143, %p144
      %p146 = scmp.ne.s32.totalorder %s132, %s133
      %p147 = scmp.eq.s32.totalorder %s22, 7
      %p148 = por %p146, %p147
      %p150 = scmp.ne.s32.totalorder %s133, %s149
      %p151 = scmp.eq.s32.totalorder %s22, 0
      %p152 = por %p150, %p151
      %p153 = scmp.le.s32.totalorder 1, %s16
      %p154 = scmp.lt.s32.totalorder %s16, 9
      %p155 = pnand %p153, %p154
      %p156 = pneg %p155
      // Predicated region
      $region9: #{_matmul_padded.1} parent=5 // pred_check
        _
      $region10: #{_matmul_padded.1} parent=5 // pred_check_branch
        %158 = sbr.rel (%p155) target = $region12
      $region11: #{_matmul_padded.1} parent=5 // pred_region
        %s159 = ssub.s32 %s16, 1
        // Predicated region
        $region13: #{_matmul_padded.1} parent=11 // pred_check
          %p160 = pneg %p91
        $region14: #{_matmul_padded.1} parent=11 // pred_check_branch
          %162 = sbr.rel (%p160) target = $region16
        $region15: #{_matmul_padded.1} parent=11 // pred_region
          %s163 = smul.u32 32, %s28
          %s164 = smul.u32 2, %s27
          %s166 = ssub.s32 8192, 8192
          %167 = vsyncadd [#allocation7], %s166
          %s168 = smul.addr %s163, 2
          %s169 = sadd.s32 %s164, %s168
          %s170 = smul.addr %s169, 128
          %s171 = scalar_lea.hbm %s1, %s170
          %s172 = sshll.u32 [#allocation6], 4
          %s173 = int_to_ptr.vmem [resolvable:$true] %s172
          %178 = dma.hbm_to_vmem [thread:$0]  %s171, 8192, %s173, [#allocation7], 256, 256, 16
        $region16: #{_matmul_padded.1} parent=11 // pred_fallthru
          _
        // Predicated region
        $region17: #{_matmul_padded.1} parent=11 // pred_check
          %p179 = pneg %p117
        $region18: #{_matmul_padded.1} parent=11 // pred_check_branch
          %181 = sbr.rel (%p179) target = $region20
        $region19: #{_matmul_padded.1} parent=11 // pred_region
          %s182 = smul.u32 2, %s27
          %s184 = ssub.s32 32, 32
          %185 = vsyncadd [#allocation7], %s184
          %s186 = smul.addr %s182, 16
          %s187 = scalar_lea.hbm %s2, %s186
          %s189 = sshll.u32 [#allocation8], 4
          %s190 = int_to_ptr.vmem [resolvable:$true] %s189
          %192 = dma.hbm_to_vmem [thread:$0]  %s187, 32, %s190, [#allocation7]
        $region20: #{_matmul_padded.1} parent=11 // pred_fallthru
          _
      $region12: #{_matmul_padded.1} parent=5 // pred_fallthru
        _
      %p193 = scmp.lt.s32.totalorder %s16, 8
      // Predicated region
      $region21: #{_matmul_padded.1} parent=5 // pred_check
        %p194 = pneg %p193
      $region22: #{_matmul_padded.1} parent=5 // pred_check_branch
        %196 = sbr.rel (%p194) target = $region24
      $region23: #{_matmul_padded.1} parent=5 // pred_region
        // Predicated region
        $region25: #{_matmul_padded.1} parent=23 // pred_check
          %p197 = pneg %p57
        $region26: #{_matmul_padded.1} parent=23 // pred_check_branch
          %199 = sbr.rel (%p197) target = $region28
        $region27: #{_matmul_padded.1} parent=23 // pred_region
          %s200 = sand.u32 %s47, 1
          %s201 = scalar_lea.sflag [#allocation4], %s200
          %s202 = sand.u32 %s47, 1
          %s203 = smul.addr %s202, 512
          %s204 = scalar_lea.vmem [#allocation3], %s203
          %s205 = smul.u32 32, %s23
          %s206 = smul.u32 2, %s25
          %s208 = ssub.s32 8192, 8192
          %209 = vsyncadd %s201, %s208
          %s210 = smul.addr %s205, 2
          %s211 = sadd.s32 %s206, %s210
          %s212 = smul.addr %s211, 128
          %s213 = scalar_lea.hbm %s0, %s212
          %s214 = sshll.u32 %s204, 4
          %s215 = int_to_ptr.vmem [resolvable:$true] %s214
          %220 = dma.hbm_to_vmem [thread:$0]  %s213, 8192, %s215, %s201, 256, 256, 16
        $region28: #{_matmul_padded.1} parent=23 // pred_fallthru
          _
      $region24: #{_matmul_padded.1} parent=5 // pred_fallthru
        _
      %p221 = scmp.le.s32.totalorder 1, %s16
      %p222 = scmp.lt.s32.totalorder %s16, 9
      %p223 = pnand %p221, %p222
      %p224 = pneg %p223
      // Predicated region
      $region29: #{_matmul_padded.1} parent=5 // pred_check
        _
      $region30: #{_matmul_padded.1} parent=5 // pred_check_branch
        %226 = sbr.rel (%p223) target = $region32
      $region31: #{_matmul_padded.1} parent=5 // pred_region
        %s227 = ssub.s32 %s16, 1
        %s228 = sand.u32 %s50, 1
        %s229 = scalar_lea.sflag [#allocation4], %s228
        %s230 = sand.u32 %s50, 1
        %s231 = smul.addr %s230, 512
        %s232 = scalar_lea.vmem [#allocation3], %s231
        // Predicated region
        $region33: #{_matmul_padded.1} parent=31 // pred_check
          %p233 = pneg %p63
        $region34: #{_matmul_padded.1} parent=31 // pred_check_branch
          %235 = sbr.rel (%p233) target = $region36
        $region35: #{_matmul_padded.1} parent=31 // pred_region
          %236 = dma.done %s229, 8192
        $region36: #{_matmul_padded.1} parent=31 // pred_fallthru
          _
        // Predicated region
        $region37: #{_matmul_padded.1} parent=31 // pred_check
          %p237 = pneg %p91
        $region38: #{_matmul_padded.1} parent=31 // pred_check_branch
          %239 = sbr.rel (%p237) target = $region40
        $region39: #{_matmul_padded.1} parent=31 // pred_region
          %240 = dma.done [#allocation7], 8192
        $region40: #{_matmul_padded.1} parent=31 // pred_fallthru
          _
        // Predicated region
        $region41: #{_matmul_padded.1} parent=31 // pred_check
          %p241 = pneg %p117
        $region42: #{_matmul_padded.1} parent=31 // pred_check_branch
          %243 = sbr.rel (%p241) target = $region44
        $region43: #{_matmul_padded.1} parent=31 // pred_region
          %244 = dma.done [#allocation7], 32
        $region44: #{_matmul_padded.1} parent=31 // pred_fallthru
          _
        %s245 = sand.u32 %s50, 1
        %s246 = scalar_lea.sflag [#allocation4], %s245
        %s247 = sand.u32 %s50, 1
        %s248 = smul.addr %s247, 512
        %s249 = scalar_lea.vmem [#allocation3], %s248
        %p250 = pneg %p63
        %p251 = pneg %p60
        %p252 = pneg %p91
        %p253 = pneg %p88
        %p254 = pneg %p117
        %p255 = pneg %p114
        %p256 = pneg %p145
        %p257 = pneg %p142
        %s258 = sand.u32 %s132, 1
        %s259 = scalar_lea.sflag [#allocation5], %s258
        %s260 = sand.u32 %s132, 1
        %s261 = smul.addr %s260, 512
        %s262 = scalar_lea.vmem [#allocation9], %s261
        %s263 = smul.u32 32, %s26
        %s264 = smul.u32 2, %s28
        %s265 = smul.u32 32, %s28
        %s266 = smul.u32 2, %s27
        %s267 = smul.u32 2, %s27
        %s268 = smul.u32 32, %s26
        %s269 = smul.u32 2, %s27
        %p270 = scmp.eq.s32.totalorder %s28, 0
        // Predicated region
        $region45: #{_matmul_padded.1} parent=31 // pred_check
          %p271 = pneg %p270
        $region46: #{_matmul_padded.1} parent=31 // pred_check_branch
          %273 = sbr.rel (%p271) target = $region48
        $region47: #{_matmul_padded.1} parent=31 // pred_region
          %274 = vst [vmem:[#allocation2] sm:$0xff] 0.0
          %275 = vst [vmem:[#allocation2 + $0x8] sm:$0xff] 0.0
          %276 = vst [vmem:[#allocation2 + $0x10] sm:$0xff] 0.0
          %277 = vst [vmem:[#allocation2 + $0x18] sm:$0xff] 0.0
          %278 = vst [vmem:[#allocation2 + $0x20] sm:$0xff] 0.0
          %279 = vst [vmem:[#allocation2 + $0x28] sm:$0xff] 0.0
          %280 = vst [vmem:[#allocation2 + $0x30] sm:$0xff] 0.0
          %281 = vst [vmem:[#allocation2 + $0x38] sm:$0xff] 0.0
          %282 = vst [vmem:[#allocation2 + $0x40] sm:$0xff] 0.0
          %283 = vst [vmem:[#allocation2 + $0x48] sm:$0xff] 0.0
          %284 = vst [vmem:[#allocation2 + $0x50] sm:$0xff] 0.0
          %285 = vst [vmem:[#allocation2 + $0x58] sm:$0xff] 0.0
          %286 = vst [vmem:[#allocation2 + $0x60] sm:$0xff] 0.0
          %287 = vst [vmem:[#allocation2 + $0x68] sm:$0xff] 0.0
          %288 = vst [vmem:[#allocation2 + $0x70] sm:$0xff] 0.0
          %289 = vst [vmem:[#allocation2 + $0x78] sm:$0xff] 0.0
          %290 = vst [vmem:[#allocation2 + $0x80] sm:$0xff] 0.0
          %291 = vst [vmem:[#allocation2 + $0x88] sm:$0xff] 0.0
          %292 = vst [vmem:[#allocation2 + $0x90] sm:$0xff] 0.0
          %293 = vst [vmem:[#allocation2 + $0x98] sm:$0xff] 0.0
          %294 = vst [vmem:[#allocation2 + $0xa0] sm:$0xff] 0.0
          %295 = vst [vmem:[#allocation2 + $0xa8] sm:$0xff] 0.0
          %296 = vst [vmem:[#allocation2 + $0xb0] sm:$0xff] 0.0
          %297 = vst [vmem:[#allocation2 + $0xb8] sm:$0xff] 0.0
          %298 = vst [vmem:[#allocation2 + $0xc0] sm:$0xff] 0.0
          %299 = vst [vmem:[#allocation2 + $0xc8] sm:$0xff] 0.0
          %300 = vst [vmem:[#allocation2 + $0xd0] sm:$0xff] 0.0
          %301 = vst [vmem:[#allocation2 + $0xd8] sm:$0xff] 0.0
          %302 = vst [vmem:[#allocation2 + $0xe0] sm:$0xff] 0.0
          %303 = vst [vmem:[#allocation2 + $0xe8] sm:$0xff] 0.0
          %304 = vst [vmem:[#allocation2 + $0xf0] sm:$0xff] 0.0
          %305 = vst [vmem:[#allocation2 + $0xf8] sm:$0xff] 0.0
          %306 = vst [vmem:[#allocation2 + $0x100] sm:$0xff] 0.0
          %307 = vst [vmem:[#allocation2 + $0x108] sm:$0xff] 0.0
          %308 = vst [vmem:[#allocation2 + $0x110] sm:$0xff] 0.0
          %309 = vst [vmem:[#allocation2 + $0x118] sm:$0xff] 0.0
          %310 = vst [vmem:[#allocation2 + $0x120] sm:$0xff] 0.0
          %311 = vst [vmem:[#allocation2 + $0x128] sm:$0xff] 0.0
          %312 = vst [vmem:[#allocation2 + $0x130] sm:$0xff] 0.0
          %313 = vst [vmem:[#allocation2 + $0x138] sm:$0xff] 0.0
          %314 = vst [vmem:[#allocation2 + $0x140] sm:$0xff] 0.0
          %315 = vst [vmem:[#allocation2 + $0x148] sm:$0xff] 0.0
          %316 = vst [vmem:[#allocation2 + $0x150] sm:$0xff] 0.0
          %317 = vst [vmem:[#allocation2 + $0x158] sm:$0xff] 0.0
          %318 = vst [vmem:[#allocation2 + $0x160] sm:$0xff] 0.0
          %319 = vst [vmem:[#allocation2 + $0x168] sm:$0xff] 0.0
          %320 = vst [vmem:[#allocation2 + $0x170] sm:$0xff] 0.0
          %321 = vst [vmem:[#allocation2 + $0x178] sm:$0xff] 0.0
          %322 = vst [vmem:[#allocation2 + $0x180] sm:$0xff] 0.0
          %323 = vst [vmem:[#allocation2 + $0x188] sm:$0xff] 0.0
          %324 = vst [vmem:[#allocation2 + $0x190] sm:$0xff] 0.0
          %325 = vst [vmem:[#allocation2 + $0x198] sm:$0xff] 0.0
          %326 = vst [vmem:[#allocation2 + $0x1a0] sm:$0xff] 0.0
          %327 = vst [vmem:[#allocation2 + $0x1a8] sm:$0xff] 0.0
          %328 = vst [vmem:[#allocation2 + $0x1b0] sm:$0xff] 0.0
          %329 = vst [vmem:[#allocation2 + $0x1b8] sm:$0xff] 0.0
          %330 = vst [vmem:[#allocation2 + $0x1c0] sm:$0xff] 0.0
          %331 = vst [vmem:[#allocation2 + $0x1c8] sm:$0xff] 0.0
          %332 = vst [vmem:[#allocation2 + $0x1d0] sm:$0xff] 0.0
          %333 = vst [vmem:[#allocation2 + $0x1d8] sm:$0xff] 0.0
          %334 = vst [vmem:[#allocation2 + $0x1e0] sm:$0xff] 0.0
          %335 = vst [vmem:[#allocation2 + $0x1e8] sm:$0xff] 0.0
          %336 = vst [vmem:[#allocation2 + $0x1f0] sm:$0xff] 0.0
          %337 = vst [vmem:[#allocation2 + $0x1f8] sm:$0xff] 0.0
        $region48: #{_matmul_padded.1} parent=31 // pred_fallthru
          _
        %v338 = vld [vmem:[#allocation2] sm:$0xff]
        %v339 = vld [vmem:[#allocation2 + $0x8] sm:$0xff]
        %v340 = vld [vmem:[#allocation2 + $0x10] sm:$0xff]
        %v341 = vld [vmem:[#allocation2 + $0x18] sm:$0xff]
        %v342 = vld [vmem:[#allocation2 + $0x20] sm:$0xff]
        %v343 = vld [vmem:[#allocation2 + $0x28] sm:$0xff]
        %v344 = vld [vmem:[#allocation2 + $0x30] sm:$0xff]
        %v345 = vld [vmem:[#allocation2 + $0x38] sm:$0xff]
        %v346 = vld [vmem:[#allocation2 + $0x40] sm:$0xff]
        %v347 = vld [vmem:[#allocation2 + $0x48] sm:$0xff]
        %v348 = vld [vmem:[#allocation2 + $0x50] sm:$0xff]
        %v349 = vld [vmem:[#allocation2 + $0x58] sm:$0xff]
        %v350 = vld [vmem:[#allocation2 + $0x60] sm:$0xff]
        %v351 = vld [vmem:[#allocation2 + $0x68] sm:$0xff]
        %v352 = vld [vmem:[#allocation2 + $0x70] sm:$0xff]
        %v353 = vld [vmem:[#allocation2 + $0x78] sm:$0xff]
        %v354 = vld [vmem:[#allocation2 + $0x80] sm:$0xff]
        %v355 = vld [vmem:[#allocation2 + $0x88] sm:$0xff]
        %v356 = vld [vmem:[#allocation2 + $0x90] sm:$0xff]
        %v357 = vld [vmem:[#allocation2 + $0x98] sm:$0xff]
        %v358 = vld [vmem:[#allocation2 + $0xa0] sm:$0xff]
        %v359 = vld [vmem:[#allocation2 + $0xa8] sm:$0xff]
        %v360 = vld [vmem:[#allocation2 + $0xb0] sm:$0xff]
        %v361 = vld [vmem:[#allocation2 + $0xb8] sm:$0xff]
        %v362 = vld [vmem:[#allocation2 + $0xc0] sm:$0xff]
        %v363 = vld [vmem:[#allocation2 + $0xc8] sm:$0xff]
        %v364 = vld [vmem:[#allocation2 + $0xd0] sm:$0xff]
        %v365 = vld [vmem:[#allocation2 + $0xd8] sm:$0xff]
        %v366 = vld [vmem:[#allocation2 + $0xe0] sm:$0xff]
        %v367 = vld [vmem:[#allocation2 + $0xe8] sm:$0xff]
        %v368 = vld [vmem:[#allocation2 + $0xf0] sm:$0xff]
        %v369 = vld [vmem:[#allocation2 + $0xf8] sm:$0xff]
        %v370 = vld [vmem:[#allocation2 + $0x100] sm:$0xff]
        %v371 = vld [vmem:[#allocation2 + $0x108] sm:$0xff]
        %v372 = vld [vmem:[#allocation2 + $0x110] sm:$0xff]
        %v373 = vld [vmem:[#allocation2 + $0x118] sm:$0xff]
        %v374 = vld [vmem:[#allocation2 + $0x120] sm:$0xff]
        %v375 = vld [vmem:[#allocation2 + $0x128] sm:$0xff]
        %v376 = vld [vmem:[#allocation2 + $0x130] sm:$0xff]
        %v377 = vld [vmem:[#allocation2 + $0x138] sm:$0xff]
        %v378 = vld [vmem:[#allocation2 + $0x140] sm:$0xff]
        %v379 = vld [vmem:[#allocation2 + $0x148] sm:$0xff]
        %v380 = vld [vmem:[#allocation2 + $0x150] sm:$0xff]
        %v381 = vld [vmem:[#allocation2 + $0x158] sm:$0xff]
        %v382 = vld [vmem:[#allocation2 + $0x160] sm:$0xff]
        %v383 = vld [vmem:[#allocation2 + $0x168] sm:$0xff]
        %v384 = vld [vmem:[#allocation2 + $0x170] sm:$0xff]
        %v385 = vld [vmem:[#allocation2 + $0x178] sm:$0xff]
        %v386 = vld [vmem:[#allocation2 + $0x180] sm:$0xff]
        %v387 = vld [vmem:[#allocation2 + $0x188] sm:$0xff]
        %v388 = vld [vmem:[#allocation2 + $0x190] sm:$0xff]
        %v389 = vld [vmem:[#allocation2 + $0x198] sm:$0xff]
        %v390 = vld [vmem:[#allocation2 + $0x1a0] sm:$0xff]
        %v391 = vld [vmem:[#allocation2 + $0x1a8] sm:$0xff]
        %v392 = vld [vmem:[#allocation2 + $0x1b0] sm:$0xff]
        %v393 = vld [vmem:[#allocation2 + $0x1b8] sm:$0xff]
        %v394 = vld [vmem:[#allocation2 + $0x1c0] sm:$0xff]
        %v395 = vld [vmem:[#allocation2 + $0x1c8] sm:$0xff]
        %v396 = vld [vmem:[#allocation2 + $0x1d0] sm:$0xff]
        %v397 = vld [vmem:[#allocation2 + $0x1d8] sm:$0xff]
        %v398 = vld [vmem:[#allocation2 + $0x1e0] sm:$0xff]
        %v399 = vld [vmem:[#allocation2 + $0x1e8] sm:$0xff]
        %v400 = vld [vmem:[#allocation2 + $0x1f0] sm:$0xff]
        %v401 = vld [vmem:[#allocation2 + $0x1f8] sm:$0xff]
        %v402 = vld [vmem:[%s232] sm:$0xff]
        %v403 = vld [vmem:[%s232 + $0x8] sm:$0xff]
        %v404 = vld [vmem:[%s232 + $0x10] sm:$0xff]
        %v405 = vld [vmem:[%s232 + $0x18] sm:$0xff]
        %v406 = vld [vmem:[%s232 + $0x20] sm:$0xff]
        %v407 = vld [vmem:[%s232 + $0x28] sm:$0xff]
        %v408 = vld [vmem:[%s232 + $0x30] sm:$0xff]
        %v409 = vld [vmem:[%s232 + $0x38] sm:$0xff]
        %v410 = vld [vmem:[%s232 + $0x40] sm:$0xff]
        %v411 = vld [vmem:[%s232 + $0x48] sm:$0xff]
        %v412 = vld [vmem:[%s232 + $0x50] sm:$0xff]
        %v413 = vld [vmem:[%s232 + $0x58] sm:$0xff]
        %v414 = vld [vmem:[%s232 + $0x60] sm:$0xff]
        %v415 = vld [vmem:[%s232 + $0x68] sm:$0xff]
        %v416 = vld [vmem:[%s232 + $0x70] sm:$0xff]
        %v417 = vld [vmem:[%s232 + $0x78] sm:$0xff]
        %v418 = vld [vmem:[%s232 + $0x80] sm:$0xff]
        %v419 = vld [vmem:[%s232 + $0x88] sm:$0xff]
        %v420 = vld [vmem:[%s232 + $0x90] sm:$0xff]
        %v421 = vld [vmem:[%s232 + $0x98] sm:$0xff]
        %v422 = vld [vmem:[%s232 + $0xa0] sm:$0xff]
        %v423 = vld [vmem:[%s232 + $0xa8] sm:$0xff]
        %v424 = vld [vmem:[%s232 + $0xb0] sm:$0xff]
        %v425 = vld [vmem:[%s232 + $0xb8] sm:$0xff]
        %v426 = vld [vmem:[%s232 + $0xc0] sm:$0xff]
        %v427 = vld [vmem:[%s232 + $0xc8] sm:$0xff]
        %v428 = vld [vmem:[%s232 + $0xd0] sm:$0xff]
        %v429 = vld [vmem:[%s232 + $0xd8] sm:$0xff]
        %v430 = vld [vmem:[%s232 + $0xe0] sm:$0xff]
        %v431 = vld [vmem:[%s232 + $0xe8] sm:$0xff]
        %v432 = vld [vmem:[%s232 + $0xf0] sm:$0xff]
        %v433 = vld [vmem:[%s232 + $0xf8] sm:$0xff]
        %v434 = vld [vmem:[%s232 + $0x100] sm:$0xff]
        %v435 = vld [vmem:[%s232 + $0x108] sm:$0xff]
        %v436 = vld [vmem:[%s232 + $0x110] sm:$0xff]
        %v437 = vld [vmem:[%s232 + $0x118] sm:$0xff]
        %v438 = vld [vmem:[%s232 + $0x120] sm:$0xff]
        %v439 = vld [vmem:[%s232 + $0x128] sm:$0xff]
        %v440 = vld [vmem:[%s232 + $0x130] sm:$0xff]
        %v441 = vld [vmem:[%s232 + $0x138] sm:$0xff]
        %v442 = vld [vmem:[%s232 + $0x140] sm:$0xff]
        %v443 = vld [vmem:[%s232 + $0x148] sm:$0xff]
        %v444 = vld [vmem:[%s232 + $0x150] sm:$0xff]
        %v445 = vld [vmem:[%s232 + $0x158] sm:$0xff]
        %v446 = vld [vmem:[%s232 + $0x160] sm:$0xff]
        %v447 = vld [vmem:[%s232 + $0x168] sm:$0xff]
        %v448 = vld [vmem:[%s232 + $0x170] sm:$0xff]
        %v449 = vld [vmem:[%s232 + $0x178] sm:$0xff]
        %v450 = vld [vmem:[%s232 + $0x180] sm:$0xff]
        %v451 = vld [vmem:[%s232 + $0x188] sm:$0xff]
        %v452 = vld [vmem:[%s232 + $0x190] sm:$0xff]
        %v453 = vld [vmem:[%s232 + $0x198] sm:$0xff]
        %v454 = vld [vmem:[%s232 + $0x1a0] sm:$0xff]
        %v455 = vld [vmem:[%s232 + $0x1a8] sm:$0xff]
        %v456 = vld [vmem:[%s232 + $0x1b0] sm:$0xff]
        %v457 = vld [vmem:[%s232 + $0x1b8] sm:$0xff]
        %v458 = vld [vmem:[%s232 + $0x1c0] sm:$0xff]
        %v459 = vld [vmem:[%s232 + $0x1c8] sm:$0xff]
        %v460 = vld [vmem:[%s232 + $0x1d0] sm:$0xff]
        %v461 = vld [vmem:[%s232 + $0x1d8] sm:$0xff]
        %v462 = vld [vmem:[%s232 + $0x1e0] sm:$0xff]
        %v463 = vld [vmem:[%s232 + $0x1e8] sm:$0xff]
        %v464 = vld [vmem:[%s232 + $0x1f0] sm:$0xff]
        %v465 = vld [vmem:[%s232 + $0x1f8] sm:$0xff]
        %v466 = vld [vmem:[#allocation6] sm:$0xff]
        %v467 = vld [vmem:[#allocation6 + $0x8] sm:$0xff]
        %v468 = vld [vmem:[#allocation6 + $0x10] sm:$0xff]
        %v469 = vld [vmem:[#allocation6 + $0x18] sm:$0xff]
        %v470 = vld [vmem:[#allocation6 + $0x20] sm:$0xff]
        %v471 = vld [vmem:[#allocation6 + $0x28] sm:$0xff]
        %v472 = vld [vmem:[#allocation6 + $0x30] sm:$0xff]
        %v473 = vld [vmem:[#allocation6 + $0x38] sm:$0xff]
        %v474 = vld [vmem:[#allocation6 + $0x40] sm:$0xff]
        %v475 = vld [vmem:[#allocation6 + $0x48] sm:$0xff]
        %v476 = vld [vmem:[#allocation6 + $0x50] sm:$0xff]
        %v477 = vld [vmem:[#allocation6 + $0x58] sm:$0xff]
        %v478 = vld [vmem:[#allocation6 + $0x60] sm:$0xff]
        %v479 = vld [vmem:[#allocation6 + $0x68] sm:$0xff]
        %v480 = vld [vmem:[#allocation6 + $0x70] sm:$0xff]
        %v481 = vld [vmem:[#allocation6 + $0x78] sm:$0xff]
        %v482 = vld [vmem:[#allocation6 + $0x80] sm:$0xff]
        %v483 = vld [vmem:[#allocation6 + $0x88] sm:$0xff]
        %v484 = vld [vmem:[#allocation6 + $0x90] sm:$0xff]
        %v485 = vld [vmem:[#allocation6 + $0x98] sm:$0xff]
        %v486 = vld [vmem:[#allocation6 + $0xa0] sm:$0xff]
        %v487 = vld [vmem:[#allocation6 + $0xa8] sm:$0xff]
        %v488 = vld [vmem:[#allocation6 + $0xb0] sm:$0xff]
        %v489 = vld [vmem:[#allocation6 + $0xb8] sm:$0xff]
        %v490 = vld [vmem:[#allocation6 + $0xc0] sm:$0xff]
        %v491 = vld [vmem:[#allocation6 + $0xc8] sm:$0xff]
        %v492 = vld [vmem:[#allocation6 + $0xd0] sm:$0xff]
        %v493 = vld [vmem:[#allocation6 + $0xd8] sm:$0xff]
        %v494 = vld [vmem:[#allocation6 + $0xe0] sm:$0xff]
        %v495 = vld [vmem:[#allocation6 + $0xe8] sm:$0xff]
        %v496 = vld [vmem:[#allocation6 + $0xf0] sm:$0xff]
        %v497 = vld [vmem:[#allocation6 + $0xf8] sm:$0xff]
        %v498 = vld [vmem:[#allocation6 + $0x100] sm:$0xff]
        %v499 = vld [vmem:[#allocation6 + $0x108] sm:$0xff]
        %v500 = vld [vmem:[#allocation6 + $0x110] sm:$0xff]
        %v501 = vld [vmem:[#allocation6 + $0x118] sm:$0xff]
        %v502 = vld [vmem:[#allocation6 + $0x120] sm:$0xff]
        %v503 = vld [vmem:[#allocation6 + $0x128] sm:$0xff]
        %v504 = vld [vmem:[#allocation6 + $0x130] sm:$0xff]
        %v505 = vld [vmem:[#allocation6 + $0x138] sm:$0xff]
        %v506 = vld [vmem:[#allocation6 + $0x140] sm:$0xff]
        %v507 = vld [vmem:[#allocation6 + $0x148] sm:$0xff]
        %v508 = vld [vmem:[#allocation6 + $0x150] sm:$0xff]
        %v509 = vld [vmem:[#allocation6 + $0x158] sm:$0xff]
        %v510 = vld [vmem:[#allocation6 + $0x160] sm:$0xff]
        %v511 = vld [vmem:[#allocation6 + $0x168] sm:$0xff]
        %v512 = vld [vmem:[#allocation6 + $0x170] sm:$0xff]
        %v513 = vld [vmem:[#allocation6 + $0x178] sm:$0xff]
        %v514 = vld [vmem:[#allocation6 + $0x180] sm:$0xff]
        %v515 = vld [vmem:[#allocation6 + $0x188] sm:$0xff]
        %v516 = vld [vmem:[#allocation6 + $0x190] sm:$0xff]
        %v517 = vld [vmem:[#allocation6 + $0x198] sm:$0xff]
        %v518 = vld [vmem:[#allocation6 + $0x1a0] sm:$0xff]
        %v519 = vld [vmem:[#allocation6 + $0x1a8] sm:$0xff]
        %v520 = vld [vmem:[#allocation6 + $0x1b0] sm:$0xff]
        %v521 = vld [vmem:[#allocation6 + $0x1b8] sm:$0xff]
        %v522 = vld [vmem:[#allocation6 + $0x1c0] sm:$0xff]
        %v523 = vld [vmem:[#allocation6 + $0x1c8] sm:$0xff]
        %v524 = vld [vmem:[#allocation6 + $0x1d0] sm:$0xff]
        %v525 = vld [vmem:[#allocation6 + $0x1d8] sm:$0xff]
        %v526 = vld [vmem:[#allocation6 + $0x1e0] sm:$0xff]
        %v527 = vld [vmem:[#allocation6 + $0x1e8] sm:$0xff]
        %v528 = vld [vmem:[#allocation6 + $0x1f0] sm:$0xff]
        %v529 = vld [vmem:[#allocation6 + $0x1f8] sm:$0xff]
        %530 = vmatprep.subr.mxu0 %v467
        %531 = vmatpush1.msra.mxu0 %v466
        %532 = vmatprep.subr.mxu0 %v469
        %533 = vmatpush1.msra.mxu0 %v468
        %534 = vmatprep.subr.mxu0 %v471
        %535 = vmatpush1.msra.mxu0 %v470
        %536 = vmatprep.subr.mxu0 %v473
        %537 = vmatpush1.msra.mxu0 %v472
        %538 = vmatprep.subr.mxu0 %v475
        %539 = vmatpush1.msra.mxu0 %v474
        %540 = vmatprep.subr.mxu0 %v477
        %541 = vmatpush1.msra.mxu0 %v476
        %542 = vmatprep.subr.mxu0 %v479
        %543 = vmatpush1.msra.mxu0 %v478
        %544 = vmatprep.subr.mxu0 %v481
        %545 = vmatpush1.msra.mxu0 %v480
        %546 = vmatprep.subr.mxu0 %v483
        %547 = vmatpush1.msra.mxu0 %v482
        %548 = vmatprep.subr.mxu0 %v485
        %549 = vmatpush1.msra.mxu0 %v484
        %550 = vmatprep.subr.mxu0 %v487
        %551 = vmatpush1.msra.mxu0 %v486
        %552 = vmatprep.subr.mxu0 %v489
        %553 = vmatpush1.msra.mxu0 %v488
        %554 = vmatprep.subr.mxu0 %v491
        %555 = vmatpush1.msra.mxu0 %v490
        %556 = vmatprep.subr.mxu0 %v493
        %557 = vmatpush1.msra.mxu0 %v492
        %558 = vmatprep.subr.mxu0 %v495
        %559 = vmatpush1.msra.mxu0 %v494
        %560 = vmatprep.subr.mxu0 %v497
        %561 = vmatpush1.msra.mxu0 %v496
        %562 = vmatprep.subr.mxu0 %v499
        %563 = vmatpush1.msra.mxu0 %v498
        %564 = vmatprep.subr.mxu0 %v501
        %565 = vmatpush1.msra.mxu0 %v500
        %566 = vmatprep.subr.mxu0 %v503
        %567 = vmatpush1.msra.mxu0 %v502
        %568 = vmatprep.subr.mxu0 %v505
        %569 = vmatpush1.msra.mxu0 %v504
        %570 = vmatprep.subr.mxu0 %v507
        %571 = vmatpush1.msra.mxu0 %v506
        %572 = vmatprep.subr.mxu0 %v509
        %573 = vmatpush1.msra.mxu0 %v508
        %574 = vmatprep.subr.mxu0 %v511
        %575 = vmatpush1.msra.mxu0 %v510
        %576 = vmatprep.subr.mxu0 %v513
        %577 = vmatpush1.msra.mxu0 %v512
        %578 = vmatprep.subr.mxu0 %v515
        %579 = vmatpush1.msra.mxu0 %v514
        %580 = vmatprep.subr.mxu0 %v517
        %581 = vmatpush1.msra.mxu0 %v516
        %582 = vmatprep.subr.mxu0 %v519
        %583 = vmatpush1.msra.mxu0 %v518
        %584 = vmatprep.subr.mxu0 %v521
        %585 = vmatpush1.msra.mxu0 %v520
        %586 = vmatprep.subr.mxu0 %v523
        %587 = vmatpush1.msra.mxu0 %v522
        %588 = vmatprep.subr.mxu0 %v525
        %589 = vmatpush1.msra.mxu0 %v524
        %590 = vmatprep.subr.mxu0 %v527
        %591 = vmatpush1.msra.mxu0 %v526
        %592 = vmatprep.subr.mxu0 %v529
        %593 = vmatpush1.msra.mxu0 %v528
        %594 = vmatprep.mubr.f32.mxu0 %v403
        %595 = vmatmul.mubr.f32.gmra.mrb[0].mxu0 %v402
        %v596 = vpop.f32.mrb[0].mxu0
        %v597 = vadd.f32 0.0, %v596
        %v598 = vpop.f32.mrb[0].mxu0
        %v599 = vadd.f32 0.0, %v598
        %600 = vmatprep.mubr.f32.mxu0 %v405
        %601 = vmatmul.mubr.f32.gmra.mrb[0].mxu0 %v404
        %v602 = vpop.f32.mrb[0].mxu0
        %v603 = vadd.f32 0.0, %v602
        %v604 = vpop.f32.mrb[0].mxu0
        %v605 = vadd.f32 0.0, %v604
        %606 = vmatprep.mubr.f32.mxu0 %v407
        %607 = vmatmul.mubr.f32.gmra.mrb[0].mxu0 %v406
        %v608 = vpop.f32.mrb[0].mxu0
        %v609 = vadd.f32 0.0, %v608
        %v610 = vpop.f32.mrb[0].mxu0
        %v611 = vadd.f32 0.0, %v610
        %612 = vmatprep.mubr.f32.mxu0 %v409
        %613 = vmatmul.mubr.f32.gmra.mrb[0].mxu0 %v408
        %v614 = vpop.f32.mrb[0].mxu0
        %v615 = vadd.f32 0.0, %v614
        %v616 = vpop.f32.mrb[0].mxu0
        %v617 = vadd.f32 0.0, %v616
        %618 = vmatprep.mubr.f32.mxu0 %v411
        %619 = vmatmul.mubr.f32.gmra.mrb[0].mxu0 %v410
        %v620 = vpop.f32.mrb[0].mxu0
        %v621 = vadd.f32 0.0, %v620
        %v622 = vpop.f32.mrb[0].mxu0
        %v623 = vadd.f32 0.0, %v622
        %624 = vmatprep.mubr.f32.mxu0 %v413
        %625 = vmatmul.mubr.f32.gmra.mrb[0].mxu0 %v412
        %v626 = vpop.f32.mrb[0].mxu0
        %v627 = vadd.f32 0.0, %v626
        %v628 = vpop.f32.mrb[0].mxu0
        %v629 = vadd.f32 0.0, %v628
        %630 = vmatprep.mubr.f32.mxu0 %v415
        %631 = vmatmul.mubr.f32.gmra.mrb[0].mxu0 %v414
        %v632 = vpop.f32.mrb[0].mxu0
        %v633 = vadd.f32 0.0, %v632
        %v634 = vpop.f32.mrb[0].mxu0
        %v635 = vadd.f32 0.0, %v634
        %636 = vmatprep.mubr.f32.mxu0 %v417
        %637 = vmatmul.mubr.f32.gmra.mrb[0].mxu0 %v416
        %v638 = vpop.f32.mrb[0].mxu0
        %v639 = vadd.f32 0.0, %v638
        %v640 = vpop.f32.mrb[0].mxu0
        %v641 = vadd.f32 0.0, %v640
        %642 = vmatprep.mubr.f32.mxu0 %v419
        %643 = vmatmul.mubr.f32.gmra.mrb[0].mxu0 %v418
        %v644 = vpop.f32.mrb[0].mxu0
        %v645 = vadd.f32 0.0, %v644
        %v646 = vpop.f32.mrb[0].mxu0
        %v647 = vadd.f32 0.0, %v646
        %648 = vmatprep.mubr.f32.mxu0 %v421
        %649 = vmatmul.mubr.f32.gmra.mrb[0].mxu0 %v420
        %v650 = vpop.f32.mrb[0].mxu0
        %v651 = vadd.f32 0.0, %v650
        %v652 = vpop.f32.mrb[0].mxu0
        %v653 = vadd.f32 0.0, %v652
        %654 = vmatprep.mubr.f32.mxu0 %v423
        %655 = vmatmul.mubr.f32.gmra.mrb[0].mxu0 %v422
        %v656 = vpop.f32.mrb[0].mxu0
        %v657 = vadd.f32 0.0, %v656
        %v658 = vpop.f32.mrb[0].mxu0
        %v659 = vadd.f32 0.0, %v658
        %660 = vmatprep.mubr.f32.mxu0 %v425
        %661 = vmatmul.mubr.f32.gmra.mrb[0].mxu0 %v424
        %v662 = vpop.f32.mrb[0].mxu0
        %v663 = vadd.f32 0.0, %v662
        %v664 = vpop.f32.mrb[0].mxu0
        %v665 = vadd.f32 0.0, %v664
        %666 = vmatprep.mubr.f32.mxu0 %v427
        %667 = vmatmul.mubr.f32.gmra.mrb[0].mxu0 %v426
        %v668 = vpop.f32.mrb[0].mxu0
        %v669 = vadd.f32 0.0, %v668
        %v670 = vpop.f32.mrb[0].mxu0
        %v671 = vadd.f32 0.0, %v670
        %672 = vmatprep.mubr.f32.mxu0 %v429
        %673 = vmatmul.mubr.f32.gmra.mrb[0].mxu0 %v428
        %v674 = vpop.f32.mrb[0].mxu0
        %v675 = vadd.f32 0.0, %v674
        %v676 = vpop.f32.mrb[0].mxu0
        %v677 = vadd.f32 0.0, %v676
        %678 = vmatprep.mubr.f32.mxu0 %v431
        %679 = vmatmul.mubr.f32.gmra.mrb[0].mxu0 %v430
        %v680 = vpop.f32.mrb[0].mxu0
        %v681 = vadd.f32 0.0, %v680
        %v682 = vpop.f32.mrb[0].mxu0
        %v683 = vadd.f32 0.0, %v682
        %684 = vmatprep.mubr.f32.mxu0 %v433
        %685 = vmatmul.mubr.f32.gmra.mrb[0].mxu0 %v432
        %v686 = vpop.f32.mrb[0].mxu0
        %v687 = vadd.f32 0.0, %v686
        %v688 = vpop.f32.mrb[0].mxu0
        %v689 = vadd.f32 0.0, %v688
        %690 = vmatprep.mubr.f32.mxu0 %v435
        %691 = vmatmul.mubr.f32.gmra.mrb[0].mxu0 %v434
        %v692 = vpop.f32.mrb[0].mxu0
        %v693 = vadd.f32 0.0, %v692
        %v694 = vpop.f32.mrb[0].mxu0
        %v695 = vadd.f32 0.0, %v694
        %696 = vmatprep.mubr.f32.mxu0 %v437
        %697 = vmatmul.mubr.f32.gmra.mrb[0].mxu0 %v436
        %v698 = vpop.f32.mrb[0].mxu0
        %v699 = vadd.f32 0.0, %v698
        %v700 = vpop.f32.mrb[0].mxu0
        %v701 = vadd.f32 0.0, %v700
        %702 = vmatprep.mubr.f32.mxu0 %v439
        %703 = vmatmul.mubr.f32.gmra.mrb[0].mxu0 %v438
        %v704 = vpop.f32.mrb[0].mxu0
        %v705 = vadd.f32 0.0, %v704
        %v706 = vpop.f32.mrb[0].mxu0
        %v707 = vadd.f32 0.0, %v706
        %708 = vmatprep.mubr.f32.mxu0 %v441
        %709 = vmatmul.mubr.f32.gmra.mrb[0].mxu0 %v440
        %v710 = vpop.f32.mrb[0].mxu0
        %v711 = vadd.f32 0.0, %v710
        %v712 = vpop.f32.mrb[0].mxu0
        %v713 = vadd.f32 0.0, %v712
        %714 = vmatprep.mubr.f32.mxu0 %v443
        %715 = vmatmul.mubr.f32.gmra.mrb[0].mxu0 %v442
        %v716 = vpop.f32.mrb[0].mxu0
        %v717 = vadd.f32 0.0, %v716
        %v718 = vpop.f32.mrb[0].mxu0
        %v719 = vadd.f32 0.0, %v718
        %720 = vmatprep.mubr.f32.mxu0 %v445
        %721 = vmatmul.mubr.f32.gmra.mrb[0].mxu0 %v444
        %v722 = vpop.f32.mrb[0].mxu0
        %v723 = vadd.f32 0.0, %v722
        %v724 = vpop.f32.mrb[0].mxu0
        %v725 = vadd.f32 0.0, %v724
        %726 = vmatprep.mubr.f32.mxu0 %v447
        %727 = vmatmul.mubr.f32.gmra.mrb[0].mxu0 %v446
        %v728 = vpop.f32.mrb[0].mxu0
        %v729 = vadd.f32 0.0, %v728
        %v730 = vpop.f32.mrb[0].mxu0
        %v731 = vadd.f32 0.0, %v730
        %732 = vmatprep.mubr.f32.mxu0 %v449
        %733 = vmatmul.mubr.f32.gmra.mrb[0].mxu0 %v448
        %v734 = vpop.f32.mrb[0].mxu0
        %v735 = vadd.f32 0.0, %v734
        %v736 = vpop.f32.mrb[0].mxu0
        %v737 = vadd.f32 0.0, %v736
        %738 = vmatprep.mubr.f32.mxu0 %v451
        %739 = vmatmul.mubr.f32.gmra.mrb[0].mxu0 %v450
        %v740 = vpop.f32.mrb[0].mxu0
        %v741 = vadd.f32 0.0, %v740
        %v742 = vpop.f32.mrb[0].mxu0
        %v743 = vadd.f32 0.0, %v742
        %744 = vmatprep.mubr.f32.mxu0 %v453
        %745 = vmatmul.mubr.f32.gmra.mrb[0].mxu0 %v452
        %v746 = vpop.f32.mrb[0].mxu0
        %v747 = vadd.f32 0.0, %v746
        %v748 = vpop.f32.mrb[0].mxu0
        %v749 = vadd.f32 0.0, %v748
        %750 = vmatprep.mubr.f32.mxu0 %v455
        %751 = vmatmul.mubr.f32.gmra.mrb[0].mxu0 %v454
        %v752 = vpop.f32.mrb[0].mxu0
        %v753 = vadd.f32 0.0, %v752
        %v754 = vpop.f32.mrb[0].mxu0
        %v755 = vadd.f32 0.0, %v754
        %756 = vmatprep.mubr.f32.mxu0 %v457
        %757 = vmatmul.mubr.f32.gmra.mrb[0].mxu0 %v456
        %v758 = vpop.f32.mrb[0].mxu0
        %v759 = vadd.f32 0.0, %v758
        %v760 = vpop.f32.mrb[0].mxu0
        %v761 = vadd.f32 0.0, %v760
        %762 = vmatprep.mubr.f32.mxu0 %v459
        %763 = vmatmul.mubr.f32.gmra.mrb[0].mxu0 %v458
        %v764 = vpop.f32.mrb[0].mxu0
        %v765 = vadd.f32 0.0, %v764
        %v766 = vpop.f32.mrb[0].mxu0
        %v767 = vadd.f32 0.0, %v766
        %768 = vmatprep.mubr.f32.mxu0 %v461
        %769 = vmatmul.mubr.f32.gmra.mrb[0].mxu0 %v460
        %v770 = vpop.f32.mrb[0].mxu0
        %v771 = vadd.f32 0.0, %v770
        %v772 = vpop.f32.mrb[0].mxu0
        %v773 = vadd.f32 0.0, %v772
        %774 = vmatprep.mubr.f32.mxu0 %v463
        %775 = vmatmul.mubr.f32.gmra.mrb[0].mxu0 %v462
        %v776 = vpop.f32.mrb[0].mxu0
        %v777 = vadd.f32 0.0, %v776
        %v778 = vpop.f32.mrb[0].mxu0
        %v779 = vadd.f32 0.0, %v778
        %780 = vmatprep.mubr.f32.mxu0 %v465
        %781 = vmatmul.mubr.f32.gmra.mrb[0].mxu0 %v464
        %v782 = vpop.f32.mrb[0].mxu0
        %v783 = vadd.f32 0.0, %v782
        %v784 = vpop.f32.mrb[0].mxu0
        %v785 = vadd.f32 0.0, %v784
        %786 = vdwg.mxu0
        %v787 = vadd.f32 %v338, %v597
        %v788 = vadd.f32 %v339, %v599
        %v789 = vadd.f32 %v340, %v603
        %v790 = vadd.f32 %v341, %v605
        %v791 = vadd.f32 %v342, %v609
        %v792 = vadd.f32 %v343, %v611
        %v793 = vadd.f32 %v344, %v615
        %v794 = vadd.f32 %v345, %v617
        %v795 = vadd.f32 %v346, %v621
        %v796 = vadd.f32 %v347, %v623
        %v797 = vadd.f32 %v348, %v627
        %v798 = vadd.f32 %v349, %v629
        %v799 = vadd.f32 %v350, %v633
        %v800 = vadd.f32 %v351, %v635
        %v801 = vadd.f32 %v352, %v639
        %v802 = vadd.f32 %v353, %v641
        %v803 = vadd.f32 %v354, %v645
        %v804 = vadd.f32 %v355, %v647
        %v805 = vadd.f32 %v356, %v651
        %v806 = vadd.f32 %v357, %v653
        %v807 = vadd.f32 %v358, %v657
        %v808 = vadd.f32 %v359, %v659
        %v809 = vadd.f32 %v360, %v663
        %v810 = vadd.f32 %v361, %v665
        %v811 = vadd.f32 %v362, %v669
        %v812 = vadd.f32 %v363, %v671
        %v813 = vadd.f32 %v364, %v675
        %v814 = vadd.f32 %v365, %v677
        %v815 = vadd.f32 %v366, %v681
        %v816 = vadd.f32 %v367, %v683
        %v817 = vadd.f32 %v368, %v687
        %v818 = vadd.f32 %v369, %v689
        %v819 = vadd.f32 %v370, %v693
        %v820 = vadd.f32 %v371, %v695
        %v821 = vadd.f32 %v372, %v699
        %v822 = vadd.f32 %v373, %v701
        %v823 = vadd.f32 %v374, %v705
        %v824 = vadd.f32 %v375, %v707
        %v825 = vadd.f32 %v376, %v711
        %v826 = vadd.f32 %v377, %v713
        %v827 = vadd.f32 %v378, %v717
        %v828 = vadd.f32 %v379, %v719
        %v829 = vadd.f32 %v380, %v723
        %v830 = vadd.f32 %v381, %v725
        %v831 = vadd.f32 %v382, %v729
        %v832 = vadd.f32 %v383, %v731
        %v833 = vadd.f32 %v384, %v735
        %v834 = vadd.f32 %v385, %v737
        %v835 = vadd.f32 %v386, %v741
        %v836 = vadd.f32 %v387, %v743
        %v837 = vadd.f32 %v388, %v747
        %v838 = vadd.f32 %v389, %v749
        %v839 = vadd.f32 %v390, %v753
        %v840 = vadd.f32 %v391, %v755
        %v841 = vadd.f32 %v392, %v759
        %v842 = vadd.f32 %v393, %v761
        %v843 = vadd.f32 %v394, %v765
        %v844 = vadd.f32 %v395, %v767
        %v845 = vadd.f32 %v396, %v771
        %v846 = vadd.f32 %v397, %v773
        %v847 = vadd.f32 %v398, %v777
        %v848 = vadd.f32 %v399, %v779
        %v849 = vadd.f32 %v400, %v783
        %v850 = vadd.f32 %v401, %v785
        %851 = vst [vmem:[#allocation2] sm:$0xff] %v787
        %852 = vst [vmem:[#allocation2 + $0x8] sm:$0xff] %v788
        %853 = vst [vmem:[#allocation2 + $0x10] sm:$0xff] %v789
        %854 = vst [vmem:[#allocation2 + $0x18] sm:$0xff] %v790
        %855 = vst [vmem:[#allocation2 + $0x20] sm:$0xff] %v791
        %856 = vst [vmem:[#allocation2 + $0x28] sm:$0xff] %v792
        %857 = vst [vmem:[#allocation2 + $0x30] sm:$0xff] %v793
        %858 = vst [vmem:[#allocation2 + $0x38] sm:$0xff] %v794
        %859 = vst [vmem:[#allocation2 + $0x40] sm:$0xff] %v795
        %860 = vst [vmem:[#allocation2 + $0x48] sm:$0xff] %v796
        %861 = vst [vmem:[#allocation2 + $0x50] sm:$0xff] %v797
        %862 = vst [vmem:[#allocation2 + $0x58] sm:$0xff] %v798
        %863 = vst [vmem:[#allocation2 + $0x60] sm:$0xff] %v799
        %864 = vst [vmem:[#allocation2 + $0x68] sm:$0xff] %v800
        %865 = vst [vmem:[#allocation2 + $0x70] sm:$0xff] %v801
        %866 = vst [vmem:[#allocation2 + $0x78] sm:$0xff] %v802
        %867 = vst [vmem:[#allocation2 + $0x80] sm:$0xff] %v803
        %868 = vst [vmem:[#allocation2 + $0x88] sm:$0xff] %v804
        %869 = vst [vmem:[#allocation2 + $0x90] sm:$0xff] %v805
        %870 = vst [vmem:[#allocation2 + $0x98] sm:$0xff] %v806
        %871 = vst [vmem:[#allocation2 + $0xa0] sm:$0xff] %v807
        %872 = vst [vmem:[#allocation2 + $0xa8] sm:$0xff] %v808
        %873 = vst [vmem:[#allocation2 + $0xb0] sm:$0xff] %v809
        %874 = vst [vmem:[#allocation2 + $0xb8] sm:$0xff] %v810
        %875 = vst [vmem:[#allocation2 + $0xc0] sm:$0xff] %v811
        %876 = vst [vmem:[#allocation2 + $0xc8] sm:$0xff] %v812
        %877 = vst [vmem:[#allocation2 + $0xd0] sm:$0xff] %v813
        %878 = vst [vmem:[#allocation2 + $0xd8] sm:$0xff] %v814
        %879 = vst [vmem:[#allocation2 + $0xe0] sm:$0xff] %v815
        %880 = vst [vmem:[#allocation2 + $0xe8] sm:$0xff] %v816
        %881 = vst [vmem:[#allocation2 + $0xf0] sm:$0xff] %v817
        %882 = vst [vmem:[#allocation2 + $0xf8] sm:$0xff] %v818
        %883 = vst [vmem:[#allocation2 + $0x100] sm:$0xff] %v819
        %884 = vst [vmem:[#allocation2 + $0x108] sm:$0xff] %v820
        %885 = vst [vmem:[#allocation2 + $0x110] sm:$0xff] %v821
        %886 = vst [vmem:[#allocation2 + $0x118] sm:$0xff] %v822
        %887 = vst [vmem:[#allocation2 + $0x120] sm:$0xff] %v823
        %888 = vst [vmem:[#allocation2 + $0x128] sm:$0xff] %v824
        %889 = vst [vmem:[#allocation2 + $0x130] sm:$0xff] %v825
        %890 = vst [vmem:[#allocation2 + $0x138] sm:$0xff] %v826
        %891 = vst [vmem:[#allocation2 + $0x140] sm:$0xff] %v827
        %892 = vst [vmem:[#allocation2 + $0x148] sm:$0xff] %v828
        %893 = vst [vmem:[#allocation2 + $0x150] sm:$0xff] %v829
        %894 = vst [vmem:[#allocation2 + $0x158] sm:$0xff] %v830
        %895 = vst [vmem:[#allocation2 + $0x160] sm:$0xff] %v831
        %896 = vst [vmem:[#allocation2 + $0x168] sm:$0xff] %v832
        %897 = vst [vmem:[#allocation2 + $0x170] sm:$0xff] %v833
        %898 = vst [vmem:[#allocation2 + $0x178] sm:$0xff] %v834
        %899 = vst [vmem:[#allocation2 + $0x180] sm:$0xff] %v835
        %900 = vst [vmem:[#allocation2 + $0x188] sm:$0xff] %v836
        %901 = vst [vmem:[#allocation2 + $0x190] sm:$0xff] %v837
        %902 = vst [vmem:[#allocation2 + $0x198] sm:$0xff] %v838
        %903 = vst [vmem:[#allocation2 + $0x1a0] sm:$0xff] %v839
        %904 = vst [vmem:[#allocation2 + $0x1a8] sm:$0xff] %v840
        %905 = vst [vmem:[#allocation2 + $0x1b0] sm:$0xff] %v841
        %906 = vst [vmem:[#allocation2 + $0x1b8] sm:$0xff] %v842
        %907 = vst [vmem:[#allocation2 + $0x1c0] sm:$0xff] %v843
        %908 = vst [vmem:[#allocation2 + $0x1c8] sm:$0xff] %v844
        %909 = vst [vmem:[#allocation2 + $0x1d0] sm:$0xff] %v845
        %910 = vst [vmem:[#allocation2 + $0x1d8] sm:$0xff] %v846
        %911 = vst [vmem:[#allocation2 + $0x1e0] sm:$0xff] %v847
        %912 = vst [vmem:[#allocation2 + $0x1e8] sm:$0xff] %v848
        %913 = vst [vmem:[#allocation2 + $0x1f0] sm:$0xff] %v849
        %914 = vst [vmem:[#allocation2 + $0x1f8] sm:$0xff] %v850
        // Predicated region
        $region49: #{_matmul_padded.1} parent=31 // pred_check
          %p915 = pneg %p270
        $region50: #{_matmul_padded.1} parent=31 // pred_check_branch
          %917 = sbr.rel (%p915) target = $region52
        $region51: #{_matmul_padded.1} parent=31 // pred_region
          %v918 = vld [vmem:[#allocation2] sm:$0xff]
          %v919 = vld [vmem:[#allocation2 + $0x8] sm:$0xff]
          %v920 = vld [vmem:[#allocation2 + $0x10] sm:$0xff]
          %v921 = vld [vmem:[#allocation2 + $0x18] sm:$0xff]
          %v922 = vld [vmem:[#allocation2 + $0x20] sm:$0xff]
          %v923 = vld [vmem:[#allocation2 + $0x28] sm:$0xff]
          %v924 = vld [vmem:[#allocation2 + $0x30] sm:$0xff]
          %v925 = vld [vmem:[#allocation2 + $0x38] sm:$0xff]
          %v926 = vld [vmem:[#allocation2 + $0x40] sm:$0xff]
          %v927 = vld [vmem:[#allocation2 + $0x48] sm:$0xff]
          %v928 = vld [vmem:[#allocation2 + $0x50] sm:$0xff]
          %v929 = vld [vmem:[#allocation2 + $0x58] sm:$0xff]
          %v930 = vld [vmem:[#allocation2 + $0x60] sm:$0xff]
          %v931 = vld [vmem:[#allocation2 + $0x68] sm:$0xff]
          %v932 = vld [vmem:[#allocation2 + $0x70] sm:$0xff]
          %v933 = vld [vmem:[#allocation2 + $0x78] sm:$0xff]
          %v934 = vld [vmem:[#allocation2 + $0x80] sm:$0xff]
          %v935 = vld [vmem:[#allocation2 + $0x88] sm:$0xff]
          %v936 = vld [vmem:[#allocation2 + $0x90] sm:$0xff]
          %v937 = vld [vmem:[#allocation2 + $0x98] sm:$0xff]
          %v938 = vld [vmem:[#allocation2 + $0xa0] sm:$0xff]
          %v939 = vld [vmem:[#allocation2 + $0xa8] sm:$0xff]
          %v940 = vld [vmem:[#allocation2 + $0xb0] sm:$0xff]
          %v941 = vld [vmem:[#allocation2 + $0xb8] sm:$0xff]
          %v942 = vld [vmem:[#allocation2 + $0xc0] sm:$0xff]
          %v943 = vld [vmem:[#allocation2 + $0xc8] sm:$0xff]
          %v944 = vld [vmem:[#allocation2 + $0xd0] sm:$0xff]
          %v945 = vld [vmem:[#allocation2 + $0xd8] sm:$0xff]
          %v946 = vld [vmem:[#allocation2 + $0xe0] sm:$0xff]
          %v947 = vld [vmem:[#allocation2 + $0xe8] sm:$0xff]
          %v948 = vld [vmem:[#allocation2 + $0xf0] sm:$0xff]
          %v949 = vld [vmem:[#allocation2 + $0xf8] sm:$0xff]
          %v950 = vld [vmem:[#allocation2 + $0x100] sm:$0xff]
          %v951 = vld [vmem:[#allocation2 + $0x108] sm:$0xff]
          %v952 = vld [vmem:[#allocation2 + $0x110] sm:$0xff]
          %v953 = vld [vmem:[#allocation2 + $0x118] sm:$0xff]
          %v954 = vld [vmem:[#allocation2 + $0x120] sm:$0xff]
          %v955 = vld [vmem:[#allocation2 + $0x128] sm:$0xff]
          %v956 = vld [vmem:[#allocation2 + $0x130] sm:$0xff]
          %v957 = vld [vmem:[#allocation2 + $0x138] sm:$0xff]
          %v958 = vld [vmem:[#allocation2 + $0x140] sm:$0xff]
          %v959 = vld [vmem:[#allocation2 + $0x148] sm:$0xff]
          %v960 = vld [vmem:[#allocation2 + $0x150] sm:$0xff]
          %v961 = vld [vmem:[#allocation2 + $0x158] sm:$0xff]
          %v962 = vld [vmem:[#allocation2 + $0x160] sm:$0xff]
          %v963 = vld [vmem:[#allocation2 + $0x168] sm:$0xff]
          %v964 = vld [vmem:[#allocation2 + $0x170] sm:$0xff]
          %v965 = vld [vmem:[#allocation2 + $0x178] sm:$0xff]
          %v966 = vld [vmem:[#allocation2 + $0x180] sm:$0xff]
          %v967 = vld [vmem:[#allocation2 + $0x188] sm:$0xff]
          %v968 = vld [vmem:[#allocation2 + $0x190] sm:$0xff]
          %v969 = vld [vmem:[#allocation2 + $0x198] sm:$0xff]
          %v970 = vld [vmem:[#allocation2 + $0x1a0] sm:$0xff]
          %v971 = vld [vmem:[#allocation2 + $0x1a8] sm:$0xff]
          %v972 = vld [vmem:[#allocation2 + $0x1b0] sm:$0xff]
          %v973 = vld [vmem:[#allocation2 + $0x1b8] sm:$0xff]
          %v974 = vld [vmem:[#allocation2 + $0x1c0] sm:$0xff]
          %v975 = vld [vmem:[#allocation2 + $0x1c8] sm:$0xff]
          %v976 = vld [vmem:[#allocation2 + $0x1d0] sm:$0xff]
          %v977 = vld [vmem:[#allocation2 + $0x1d8] sm:$0xff]
          %v978 = vld [vmem:[#allocation2 + $0x1e0] sm:$0xff]
          %v979 = vld [vmem:[#allocation2 + $0x1e8] sm:$0xff]
          %v980 = vld [vmem:[#allocation2 + $0x1f0] sm:$0xff]
          %v981 = vld [vmem:[#allocation2 + $0x1f8] sm:$0xff]
          %v982 = vld [vmem:[#allocation8] sm:$0x3]
          %v984 = vlaneseq
          %v985 = vshrl.u32 %v984, 7
          %v986 = vsub.s32 0, %v985
          %v987 = vrot.slane %v982, %v986
          %v988 = vlaneseq
          %v989 = vshrl.u32 %v988, 7
          %v990 = vsub.s32 1, %v989
          %v991 = vrot.slane %v982, %v990
          %v994 = vadd.f32 %v918, %v987
          %v995 = vadd.f32 %v919, %v991
          %v996 = vadd.f32 %v920, %v987
          %v997 = vadd.f32 %v921, %v991
          %v998 = vadd.f32 %v922, %v987
          %v999 = vadd.f32 %v923, %v991
          %v1000 = vadd.f32 %v924, %v987
          %v1001 = vadd.f32 %v925, %v991
          %v1002 = vadd.f32 %v926, %v987
          %v1003 = vadd.f32 %v927, %v991
          %v1004 = vadd.f32 %v928, %v987
          %v1005 = vadd.f32 %v929, %v991
          %v1006 = vadd.f32 %v930, %v987
          %v1007 = vadd.f32 %v931, %v991
          %v1008 = vadd.f32 %v932, %v987
          %v1009 = vadd.f32 %v933, %v991
          %v1010 = vadd.f32 %v934, %v987
          %v1011 = vadd.f32 %v935, %v991
          %v1012 = vadd.f32 %v936, %v987
          %v1013 = vadd.f32 %v937, %v991
          %v1014 = vadd.f32 %v938, %v987
          %v1015 = vadd.f32 %v939, %v991
          %v1016 = vadd.f32 %v940, %v987
          %v1017 = vadd.f32 %v941, %v991
          %v1018 = vadd.f32 %v942, %v987
          %v1019 = vadd.f32 %v943, %v991
          %v1020 = vadd.f32 %v944, %v987
          %v1021 = vadd.f32 %v945, %v991
          %v1022 = vadd.f32 %v946, %v987
          %v1023 = vadd.f32 %v947, %v991
          %v1024 = vadd.f32 %v948, %v987
          %v1025 = vadd.f32 %v949, %v991
          %v1026 = vadd.f32 %v950, %v987
          %v1027 = vadd.f32 %v951, %v991
          %v1028 = vadd.f32 %v952, %v987
          %v1029 = vadd.f32 %v953, %v991
          %v1030 = vadd.f32 %v954, %v987
          %v1031 = vadd.f32 %v955, %v991
          %v1032 = vadd.f32 %v956, %v987
          %v1033 = vadd.f32 %v957, %v991
          %v1034 = vadd.f32 %v958, %v987
          %v1035 = vadd.f32 %v959, %v991
          %v1036 = vadd.f32 %v960, %v987
          %v1037 = vadd.f32 %v961, %v991
          %v1038 = vadd.f32 %v962, %v987
          %v1039 = vadd.f32 %v963, %v991
          %v1040 = vadd.f32 %v964, %v987
          %v1041 = vadd.f32 %v965, %v991
          %v1042 = vadd.f32 %v966, %v987
          %v1043 = vadd.f32 %v967, %v991
          %v1044 = vadd.f32 %v968, %v987
          %v1045 = vadd.f32 %v969, %v991
          %v1046 = vadd.f32 %v970, %v987
          %v1047 = vadd.f32 %v971, %v991
          %v1048 = vadd.f32 %v972, %v987
          %v1049 = vadd.f32 %v973, %v991
          %v1050 = vadd.f32 %v974, %v987
          %v1051 = vadd.f32 %v975, %v991
          %v1052 = vadd.f32 %v976, %v987
          %v1053 = vadd.f32 %v977, %v991
          %v1054 = vadd.f32 %v978, %v987
          %v1055 = vadd.f32 %v979, %v991
          %v1056 = vadd.f32 %v980, %v987
          %v1057 = vadd.f32 %v981, %v991
          %v1058 = vmax.f32 %v994, 0.0
          %v1059 = vmax.f32 %v995, 0.0
          %v1060 = vmax.f32 %v996, 0.0
          %v1061 = vmax.f32 %v997, 0.0
          %v1062 = vmax.f32 %v998, 0.0
          %v1063 = vmax.f32 %v999, 0.0
          %v1064 = vmax.f32 %v1000, 0.0
          %v1065 = vmax.f32 %v1001, 0.0
          %v1066 = vmax.f32 %v1002, 0.0
          %v1067 = vmax.f32 %v1003, 0.0
          %v1068 = vmax.f32 %v1004, 0.0
          %v1069 = vmax.f32 %v1005, 0.0
          %v1070 = vmax.f32 %v1006, 0.0
          %v1071 = vmax.f32 %v1007, 0.0
          %v1072 = vmax.f32 %v1008, 0.0
          %v1073 = vmax.f32 %v1009, 0.0
          %v1074 = vmax.f32 %v1010, 0.0
          %v1075 = vmax.f32 %v1011, 0.0
          %v1076 = vmax.f32 %v1012, 0.0
          %v1077 = vmax.f32 %v1013, 0.0
          %v1078 = vmax.f32 %v1014, 0.0
          %v1079 = vmax.f32 %v1015, 0.0
          %v1080 = vmax.f32 %v1016, 0.0
          %v1081 = vmax.f32 %v1017, 0.0
          %v1082 = vmax.f32 %v1018, 0.0
          %v1083 = vmax.f32 %v1019, 0.0
          %v1084 = vmax.f32 %v1020, 0.0
          %v1085 = vmax.f32 %v1021, 0.0
          %v1086 = vmax.f32 %v1022, 0.0
          %v1087 = vmax.f32 %v1023, 0.0
          %v1088 = vmax.f32 %v1024, 0.0
          %v1089 = vmax.f32 %v1025, 0.0
          %v1090 = vmax.f32 %v1026, 0.0
          %v1091 = vmax.f32 %v1027, 0.0
          %v1092 = vmax.f32 %v1028, 0.0
          %v1093 = vmax.f32 %v1029, 0.0
          %v1094 = vmax.f32 %v1030, 0.0
          %v1095 = vmax.f32 %v1031, 0.0
          %v1096 = vmax.f32 %v1032, 0.0
          %v1097 = vmax.f32 %v1033, 0.0
          %v1098 = vmax.f32 %v1034, 0.0
          %v1099 = vmax.f32 %v1035, 0.0
          %v1100 = vmax.f32 %v1036, 0.0
          %v1101 = vmax.f32 %v1037, 0.0
          %v1102 = vmax.f32 %v1038, 0.0
          %v1103 = vmax.f32 %v1039, 0.0
          %v1104 = vmax.f32 %v1040, 0.0
          %v1105 = vmax.f32 %v1041, 0.0
          %v1106 = vmax.f32 %v1042, 0.0
          %v1107 = vmax.f32 %v1043, 0.0
          %v1108 = vmax.f32 %v1044, 0.0
          %v1109 = vmax.f32 %v1045, 0.0
          %v1110 = vmax.f32 %v1046, 0.0
          %v1111 = vmax.f32 %v1047, 0.0
          %v1112 = vmax.f32 %v1048, 0.0
          %v1113 = vmax.f32 %v1049, 0.0
          %v1114 = vmax.f32 %v1050, 0.0
          %v1115 = vmax.f32 %v1051, 0.0
          %v1116 = vmax.f32 %v1052, 0.0
          %v1117 = vmax.f32 %v1053, 0.0
          %v1118 = vmax.f32 %v1054, 0.0
          %v1119 = vmax.f32 %v1055, 0.0
          %v1120 = vmax.f32 %v1056, 0.0
          %v1121 = vmax.f32 %v1057, 0.0
          %1122 = vst [vmem:[%s262] sm:$0xff] %v1058
          %1123 = vst [vmem:[%s262 + $0x8] sm:$0xff] %v1059
          %1124 = vst [vmem:[%s262 + $0x10] sm:$0xff] %v1060
          %1125 = vst [vmem:[%s262 + $0x18] sm:$0xff] %v1061
          %1126 = vst [vmem:[%s262 + $0x20] sm:$0xff] %v1062
          %1127 = vst [vmem:[%s262 + $0x28] sm:$0xff] %v1063
          %1128 = vst [vmem:[%s262 + $0x30] sm:$0xff] %v1064
          %1129 = vst [vmem:[%s262 + $0x38] sm:$0xff] %v1065
          %1130 = vst [vmem:[%s262 + $0x40] sm:$0xff] %v1066
          %1131 = vst [vmem:[%s262 + $0x48] sm:$0xff] %v1067
          %1132 = vst [vmem:[%s262 + $0x50] sm:$0xff] %v1068
          %1133 = vst [vmem:[%s262 + $0x58] sm:$0xff] %v1069
          %1134 = vst [vmem:[%s262 + $0x60] sm:$0xff] %v1070
          %1135 = vst [vmem:[%s262 + $0x68] sm:$0xff] %v1071
          %1136 = vst [vmem:[%s262 + $0x70] sm:$0xff] %v1072
          %1137 = vst [vmem:[%s262 + $0x78] sm:$0xff] %v1073
          %1138 = vst [vmem:[%s262 + $0x80] sm:$0xff] %v1074
          %1139 = vst [vmem:[%s262 + $0x88] sm:$0xff] %v1075
          %1140 = vst [vmem:[%s262 + $0x90] sm:$0xff] %v1076
          %1141 = vst [vmem:[%s262 + $0x98] sm:$0xff] %v1077
          %1142 = vst [vmem:[%s262 + $0xa0] sm:$0xff] %v1078
          %1143 = vst [vmem:[%s262 + $0xa8] sm:$0xff] %v1079
          %1144 = vst [vmem:[%s262 + $0xb0] sm:$0xff] %v1080
          %1145 = vst [vmem:[%s262 + $0xb8] sm:$0xff] %v1081
          %1146 = vst [vmem:[%s262 + $0xc0] sm:$0xff] %v1082
          %1147 = vst [vmem:[%s262 + $0xc8] sm:$0xff] %v1083
          %1148 = vst [vmem:[%s262 + $0xd0] sm:$0xff] %v1084
          %1149 = vst [vmem:[%s262 + $0xd8] sm:$0xff] %v1085
          %1150 = vst [vmem:[%s262 + $0xe0] sm:$0xff] %v1086
          %1151 = vst [vmem:[%s262 + $0xe8] sm:$0xff] %v1087
          %1152 = vst [vmem:[%s262 + $0xf0] sm:$0xff] %v1088
          %1153 = vst [vmem:[%s262 + $0xf8] sm:$0xff] %v1089
          %1154 = vst [vmem:[%s262 + $0x100] sm:$0xff] %v1090
          %1155 = vst [vmem:[%s262 + $0x108] sm:$0xff] %v1091
          %1156 = vst [vmem:[%s262 + $0x110] sm:$0xff] %v1092
          %1157 = vst [vmem:[%s262 + $0x118] sm:$0xff] %v1093
          %1158 = vst [vmem:[%s262 + $0x120] sm:$0xff] %v1094
          %1159 = vst [vmem:[%s262 + $0x128] sm:$0xff] %v1095
          %1160 = vst [vmem:[%s262 + $0x130] sm:$0xff] %v1096
          %1161 = vst [vmem:[%s262 + $0x138] sm:$0xff] %v1097
          %1162 = vst [vmem:[%s262 + $0x140] sm:$0xff] %v1098
          %1163 = vst [vmem:[%s262 + $0x148] sm:$0xff] %v1099
          %1164 = vst [vmem:[%s262 + $0x150] sm:$0xff] %v1100
          %1165 = vst [vmem:[%s262 + $0x158] sm:$0xff] %v1101
          %1166 = vst [vmem:[%s262 + $0x160] sm:$0xff] %v1102
          %1167 = vst [vmem:[%s262 + $0x168] sm:$0xff] %v1103
          %1168 = vst [vmem:[%s262 + $0x170] sm:$0xff] %v1104
          %1169 = vst [vmem:[%s262 + $0x178] sm:$0xff] %v1105
          %1170 = vst [vmem:[%s262 + $0x180] sm:$0xff] %v1106
          %1171 = vst [vmem:[%s262 + $0x188] sm:$0xff] %v1107
          %1172 = vst [vmem:[%s262 + $0x190] sm:$0xff] %v1108
          %1173 = vst [vmem:[%s262 + $0x198] sm:$0xff] %v1109
          %1174 = vst [vmem:[%s262 + $0x1a0] sm:$0xff] %v1110
          %1175 = vst [vmem:[%s262 + $0x1a8] sm:$0xff] %v1111
          %1176 = vst [vmem:[%s262 + $0x1b0] sm:$0xff] %v1112
          %1177 = vst [vmem:[%s262 + $0x1b8] sm:$0xff] %v1113
          %1178 = vst [vmem:[%s262 + $0x1c0] sm:$0xff] %v1114
          %1179 = vst [vmem:[%s262 + $0x1c8] sm:$0xff] %v1115
          %1180 = vst [vmem:[%s262 + $0x1d0] sm:$0xff] %v1116
          %1181 = vst [vmem:[%s262 + $0x1d8] sm:$0xff] %v1117
          %1182 = vst [vmem:[%s262 + $0x1e0] sm:$0xff] %v1118
          %1183 = vst [vmem:[%s262 + $0x1e8] sm:$0xff] %v1119
          %1184 = vst [vmem:[%s262 + $0x1f0] sm:$0xff] %v1120
          %1185 = vst [vmem:[%s262 + $0x1f8] sm:$0xff] %v1121
        $region52: #{_matmul_padded.1} parent=31 // pred_fallthru
          _
        %s1186 = sand.u32 %s132, 1
        %s1187 = scalar_lea.sflag [#allocation5], %s1186
        %s1188 = sand.u32 %s132, 1
        %s1189 = smul.addr %s1188, 512
        %s1190 = scalar_lea.vmem [#allocation9], %s1189
        // Predicated region
        $region53: #{_matmul_padded.1} parent=31 // pred_check
          %p1191 = pneg %p142
        $region54: #{_matmul_padded.1} parent=31 // pred_check_branch
          %1193 = sbr.rel (%p1191) target = $region56
        $region55: #{_matmul_padded.1} parent=31 // pred_region
          %s1194 = smul.u32 32, %s26
          %s1195 = smul.u32 2, %s27
          %s1197 = ssub.s32 8192, 8192
          %1198 = vsyncadd %s1187, %s1197
          %s1199 = smul.addr %s1194, 2
          %s1200 = sadd.s32 %s1195, %s1199
          %s1201 = smul.addr %s1200, 128
          %s1202 = scalar_lea.hbm %s3, %s1201
          %s1203 = sshll.u32 %s1190, 4
          %s1204 = int_to_ptr.vmem [resolvable:$true] %s1203
          %1209 = dma.vmem_to_hbm [thread:$0]  %s1204, 8192, %s1202, %s1187, 256, 256, 16
        $region56: #{_matmul_padded.1} parent=31 // pred_fallthru
          _
      $region32: #{_matmul_padded.1} parent=5 // pred_fallthru
        _
      %p1210 = scmp.le.s32.totalorder 2, %s16
      // Predicated region
      $region57: #{_matmul_padded.1} parent=5 // pred_check
        %p1211 = pneg %p1210
      $region58: #{_matmul_padded.1} parent=5 // pred_check_branch
        %1213 = sbr.rel (%p1211) target = $region60
      $region59: #{_matmul_padded.1} parent=5 // pred_region
        %s1214 = ssub.s32 %s16, 2
        // Predicated region
        $region61: #{_matmul_padded.1} parent=59 // pred_check
          %p1215 = pneg %p148
        $region62: #{_matmul_padded.1} parent=59 // pred_check_branch
          %1217 = sbr.rel (%p1215) target = $region64
        $region63: #{_matmul_padded.1} parent=59 // pred_region
          %s1218 = sand.u32 %s133, 1
          %s1219 = scalar_lea.sflag [#allocation5], %s1218
          %s1220 = sand.u32 %s133, 1
          %s1221 = smul.addr %s1220, 512
          %s1222 = scalar_lea.vmem [#allocation9], %s1221
          %1223 = dma.done %s1219, 8192
        $region64: #{_matmul_padded.1} parent=59 // pred_fallthru
          _
      $region60: #{_matmul_padded.1} parent=5 // pred_fallthru
        _
    $region6: #{_matmul_padded.1} parent=1 // loop_footer
      %s20 = sadd.s32 1, %s16
    $region7: #{_matmul_padded.1} parent=1 // loop_footer_branch
      %15 = sbr.rel target = $region3
    $region8: #{_matmul_padded.1} parent=1 // loop_exit
      _
    %1224 = vsyncpa [#allocation4], 1
    %s1225 = scalar_lea.sflag [#allocation4], 1
    %1226 = vsyncpa %s1225, 1
    %1227 = vsyncpa [#allocation7], 1
    %1228 = vsyncpa [#allocation5], 1
    %s1229 = scalar_lea.sflag [#allocation5], 1
    %1230 = vsyncpa %s1229, 1

</llo_original>
